<compile_context>
chip_gen: v7x
topology: tpu7x:2x2x1
jax: 0.10.0
libtpu: 0.0.40
codegen_flags: <defaults>
</compile_context>

<pallas_src>
import numpy as np
import jax
import jax.numpy as jnp
from jax import lax
from jax.experimental import pallas as pl
from jax.experimental.pallas import tpu as pltpu

# ---------------- problem configuration (small, ASPP-style) -----------------
N, CIN, H, W = 2, 4, 16, 16          # input  (NCHW): (2, 4, 16, 16)
COUT = 8                             # planes
KH = KW = 3                          # kernel_size
DIL = 2                              # dilation
PAD = 2                              # padding == dilation -> same spatial size
EPS = 1e-5                           # BatchNorm eps (PyTorch default)

HP, WP = H + 2 * PAD, W + 2 * PAD    # padded spatial dims (20, 20)
NPIX = N * H * W                     # 512 valid output pixels
QW = N * HP * WP                     # 800 padded-grid pixels (kernel lane axis)
_MAX_SHIFT = (KH - 1) * DIL * WP + (KW - 1) * DIL    # 84
FLATP = 896                          # QW + max shift, rounded up to 7*128 lanes
assert QW + _MAX_SHIFT <= FLATP

# Static validity mask over the padded pixel grid (1 on the 512 real output
# pixels, 0 on conv-padding positions). Built once at trace time; under jit it
# is just a small constant operand.
_q = np.arange(QW)
_rem = _q % (HP * WP)
_VALID_MASK = jnp.asarray(
    (((_rem // WP) < H) & ((_rem % WP) < W)).reshape(1, QW), dtype=jnp.float32)


# ------------------------------- Pallas kernel ------------------------------
def aspp_kernel(xf_ref, w_ref, gb_ref, mask_ref, o_ref):
    # xf_ref:   (CIN, FLATP)        zero-padded input, flattened padded grid on lanes
    # w_ref:    (KH*KW, COUT, CIN)  per-tap conv weight matrices (tap = kh*KW + kw)
    # gb_ref:   (COUT, 2)           col 0 = BN gamma, col 1 = BN beta
    # mask_ref: (1, QW)             1.0 on valid output pixels, 0.0 on padding
    # o_ref:    (COUT, QW)          conv + BN + ReLU on the padded grid (wrapper crops)
    xf = xf_ref[...]

    # Atrous conv: 9 shifted MXU matmuls accumulated in f32. Because the conv
    # padding equals the dilation, tap (kh, kw) of every output pixel is the
    # same flat lane shift of the padded grid -> no im2col patch matrix needed.
    acc = jnp.zeros((COUT, QW), jnp.float32)
    for kh in range(KH):
        for kw in range(KW):
            off = kh * DIL * WP + kw * DIL
            acc = acc + jnp.dot(w_ref[kh * KW + kw],
                                xf[:, off:off + QW],
                                preferred_element_type=jnp.float32)

    # BatchNorm training-mode batch statistics (biased variance) over the 512
    # valid pixels only, with a single fused XLU reduction over [y ; y*y].
    yv = acc * mask_ref[...]
    sums = jnp.sum(jnp.concatenate([yv, yv * yv], axis=0),
                   axis=1, keepdims=True)                       # (2*COUT, 1)
    inv_n = jnp.float32(1.0 / NPIX)
    mean = sums[:COUT] * inv_n
    var = jnp.maximum(sums[COUT:] * inv_n - mean * mean, 0.0)   # clamp cancellation

    # Fold gamma / rsqrt / beta / mean into one fused scale + shift, then ReLU.
    scale = gb_ref[:, 0:1] * lax.rsqrt(var + EPS)
    shift = gb_ref[:, 1:2] - mean * scale
    o_ref[...] = jnp.maximum(acc * scale + shift, 0.0)


# ------------------------------ Python wrapper -------------------------------
@jax.jit
def aspp_forward(x_nchw, weight_oihw, gamma, beta):
    """x_nchw: (N, CIN, H, W). weight_oihw: (COUT, CIN, KH, KW). Returns NCHW."""
    x = x_nchw.astype(jnp.float32)
    w = weight_oihw.astype(jnp.float32)

    # Layout plumbing only: channel-major, conv zero-padding, flatten padded grid.
    x_t = jnp.transpose(x, (1, 0, 2, 3))                               # (CIN, N, H, W)
    x_pad = jnp.pad(x_t, ((0, 0), (0, 0), (PAD, PAD), (PAD, PAD)))     # (CIN, N, HP, WP)
    xf = x_pad.reshape(CIN, QW)
    xf = jnp.pad(xf, ((0, 0), (0, FLATP - QW)))                        # (CIN, FLATP) ~14 KB

    # Weights OIHW -> per-tap (COUT, CIN) matrices, tap index = kh*KW + kw.
    wt = jnp.transpose(w, (2, 3, 0, 1)).reshape(KH * KW, COUT, CIN)    # (9, 8, 4)

    # BN affine params merged into one (COUT, 2) operand.
    gb = jnp.stack([gamma.astype(jnp.float32), beta.astype(jnp.float32)], axis=1)

    out_flat = pl.pallas_call(
        aspp_kernel,
        out_shape=jax.ShapeDtypeStruct((COUT, QW), jnp.float32),
        in_specs=[
            pl.BlockSpec(memory_space=pltpu.MemorySpace.VMEM),
            pl.BlockSpec(memory_space=pltpu.MemorySpace.VMEM),
            pl.BlockSpec(memory_space=pltpu.MemorySpace.VMEM),
            pl.BlockSpec(memory_space=pltpu.MemorySpace.VMEM),
        ],
        out_specs=pl.BlockSpec(memory_space=pltpu.MemorySpace.VMEM),
    )(xf, wt, gb, _VALID_MASK)

    # (COUT, N*HP*WP) -> crop conv padding -> (N, COUT, H, W)
    out = out_flat.reshape(COUT, N, HP, WP)[:, :, :H, :W]
    return jnp.transpose(out, (1, 0, 2, 3))


# ------------------------------ pure-JAX reference ---------------------------
def aspp_reference(x_nchw, weight_oihw, gamma, beta):
    y = lax.conv_general_dilated(
        x_nchw.astype(jnp.float32), weight_oihw.astype(jnp.float32),
        window_strides=(1, 1), padding=[(PAD, PAD), (PAD, PAD)],
        rhs_dilation=(DIL, DIL),
        dimension_numbers=("NCHW", "OIHW", "NCHW"))
    mean = jnp.mean(y, axis=(0, 2, 3), keepdims=True)
    var = jnp.mean((y - mean) ** 2, axis=(0, 2, 3), keepdims=True)
    y = (y - mean) * lax.rsqrt(var + EPS)
    y = y * gamma.reshape(1, COUT, 1, 1) + beta.reshape(1, COUT, 1, 1)
    return jnp.maximum(y, 0.0)


if __name__ == "__main__":
    key = jax.random.PRNGKey(0)
    kx, kw = jax.random.split(key)

    # deterministic parameter init mirroring _init_weight():
    #   conv: kaiming_normal_ (fan_in = CIN*KH*KW, gain = sqrt(2))
    #   bn:   weight = 1, bias = 0
    fan_in = CIN * KH * KW
    std = (2.0 / fan_in) ** 0.5
    weight = jax.random.normal(kw, (COUT, CIN, KH, KW), jnp.float32) * std
    gamma = jnp.ones((COUT,), jnp.float32)
    beta = jnp.zeros((COUT,), jnp.float32)

    x = jax.random.normal(kx, (N, CIN, H, W), jnp.float32)

    out = jax.block_until_ready(aspp_forward(x, weight, gamma, beta))
    ref = jax.block_until_ready(aspp_reference(x, weight, gamma, beta))

    assert out.shape == (N, COUT, H, W)
    assert bool(jnp.allclose(out, ref, atol=2e-3, rtol=2e-3)), "mismatch vs reference"

    print("KERNEL_OK")
</pallas_src>

<mosaic_0001>
module attributes {stable_mosaic.version = 11 : i64} {
  func.func @aspp_kernel(%arg0: memref<4x896xf32, #tpu.memory_space<vmem>>, %arg1: memref<9x8x4xf32, #tpu.memory_space<vmem>>, %arg2: memref<8x2xf32, #tpu.memory_space<vmem>>, %arg3: memref<1x800xf32, #tpu.memory_space<vmem>>, %arg4: memref<8x800xf32, #tpu.memory_space<vmem>>) attributes {dimension_semantics = [], scalar_prefetch = 0 : i64, scratch_operands = 0 : i64, tpu.core_type = #tpu.core_type<tc>} {
    %c0 = arith.constant 0 : index
    %c0_0 = arith.constant 0 : index
    %0 = vector.load %arg0[%c0, %c0_0] : memref<4x896xf32, #tpu.memory_space<vmem>>, vector<4x896xf32>
    %cst = arith.constant 0.000000e+00 : f32
    %1 = vector.broadcast %cst : f32 to vector<8x800xf32>
    %c0_1 = arith.constant 0 : index
    %c0_2 = arith.constant 0 : index
    %c0_3 = arith.constant 0 : index
    %2 = vector.load %arg1[%c0_1, %c0_2, %c0_3] : memref<9x8x4xf32, #tpu.memory_space<vmem>>, vector<1x8x4xf32>
    %3 = vector.shape_cast %2 : vector<1x8x4xf32> to vector<8x4xf32>
    %4 = vector.extract_strided_slice %0 {offsets = [0, 0], sizes = [4, 800], strides = [1, 1]} : vector<4x896xf32> to vector<4x800xf32>
    %cst_4 = arith.constant dense<0.000000e+00> : vector<8x800xf32>
    %5 = tpu.matmul %3, %4, %cst_4 {dimension_numbers = #tpu.dot_dimension_numbers<[1], [0], [0], [1], [0, 0, 1, 1], [], []>} : vector<8x4xf32>, vector<4x800xf32>, vector<8x800xf32> -> vector<8x800xf32>
    %6 = arith.addf %1, %5 : vector<8x800xf32>
    %c1 = arith.constant 1 : index
    %c0_5 = arith.constant 0 : index
    %c0_6 = arith.constant 0 : index
    %7 = vector.load %arg1[%c1, %c0_5, %c0_6] : memref<9x8x4xf32, #tpu.memory_space<vmem>>, vector<1x8x4xf32>
    %8 = vector.shape_cast %7 : vector<1x8x4xf32> to vector<8x4xf32>
    %9 = vector.extract_strided_slice %0 {offsets = [0, 2], sizes = [4, 800], strides = [1, 1]} : vector<4x896xf32> to vector<4x800xf32>
    %cst_7 = arith.constant dense<0.000000e+00> : vector<8x800xf32>
    %10 = tpu.matmul %8, %9, %cst_7 {dimension_numbers = #tpu.dot_dimension_numbers<[1], [0], [0], [1], [0, 0, 1, 1], [], []>} : vector<8x4xf32>, vector<4x800xf32>, vector<8x800xf32> -> vector<8x800xf32>
    %11 = arith.addf %6, %10 : vector<8x800xf32>
    %c2 = arith.constant 2 : index
    %c0_8 = arith.constant 0 : index
    %c0_9 = arith.constant 0 : index
    %12 = vector.load %arg1[%c2, %c0_8, %c0_9] : memref<9x8x4xf32, #tpu.memory_space<vmem>>, vector<1x8x4xf32>
    %13 = vector.shape_cast %12 : vector<1x8x4xf32> to vector<8x4xf32>
    %14 = vector.extract_strided_slice %0 {offsets = [0, 4], sizes = [4, 800], strides = [1, 1]} : vector<4x896xf32> to vector<4x800xf32>
    %cst_10 = arith.constant dense<0.000000e+00> : vector<8x800xf32>
    %15 = tpu.matmul %13, %14, %cst_10 {dimension_numbers = #tpu.dot_dimension_numbers<[1], [0], [0], [1], [0, 0, 1, 1], [], []>} : vector<8x4xf32>, vector<4x800xf32>, vector<8x800xf32> -> vector<8x800xf32>
    %16 = arith.addf %11, %15 : vector<8x800xf32>
    %c3 = arith.constant 3 : index
    %c0_11 = arith.constant 0 : index
    %c0_12 = arith.constant 0 : index
    %17 = vector.load %arg1[%c3, %c0_11, %c0_12] : memref<9x8x4xf32, #tpu.memory_space<vmem>>, vector<1x8x4xf32>
    %18 = vector.shape_cast %17 : vector<1x8x4xf32> to vector<8x4xf32>
    %19 = vector.extract_strided_slice %0 {offsets = [0, 40], sizes = [4, 800], strides = [1, 1]} : vector<4x896xf32> to vector<4x800xf32>
    %cst_13 = arith.constant dense<0.000000e+00> : vector<8x800xf32>
    %20 = tpu.matmul %18, %19, %cst_13 {dimension_numbers = #tpu.dot_dimension_numbers<[1], [0], [0], [1], [0, 0, 1, 1], [], []>} : vector<8x4xf32>, vector<4x800xf32>, vector<8x800xf32> -> vector<8x800xf32>
    %21 = arith.addf %16, %20 : vector<8x800xf32>
    %c4 = arith.constant 4 : index
    %c0_14 = arith.constant 0 : index
    %c0_15 = arith.constant 0 : index
    %22 = vector.load %arg1[%c4, %c0_14, %c0_15] : memref<9x8x4xf32, #tpu.memory_space<vmem>>, vector<1x8x4xf32>
    %23 = vector.shape_cast %22 : vector<1x8x4xf32> to vector<8x4xf32>
    %24 = vector.extract_strided_slice %0 {offsets = [0, 42], sizes = [4, 800], strides = [1, 1]} : vector<4x896xf32> to vector<4x800xf32>
    %cst_16 = arith.constant dense<0.000000e+00> : vector<8x800xf32>
    %25 = tpu.matmul %23, %24, %cst_16 {dimension_numbers = #tpu.dot_dimension_numbers<[1], [0], [0], [1], [0, 0, 1, 1], [], []>} : vector<8x4xf32>, vector<4x800xf32>, vector<8x800xf32> -> vector<8x800xf32>
    %26 = arith.addf %21, %25 : vector<8x800xf32>
    %c5 = arith.constant 5 : index
    %c0_17 = arith.constant 0 : index
    %c0_18 = arith.constant 0 : index
    %27 = vector.load %arg1[%c5, %c0_17, %c0_18] : memref<9x8x4xf32, #tpu.memory_space<vmem>>, vector<1x8x4xf32>
    %28 = vector.shape_cast %27 : vector<1x8x4xf32> to vector<8x4xf32>
    %29 = vector.extract_strided_slice %0 {offsets = [0, 44], sizes = [4, 800], strides = [1, 1]} : vector<4x896xf32> to vector<4x800xf32>
    %cst_19 = arith.constant dense<0.000000e+00> : vector<8x800xf32>
    %30 = tpu.matmul %28, %29, %cst_19 {dimension_numbers = #tpu.dot_dimension_numbers<[1], [0], [0], [1], [0, 0, 1, 1], [], []>} : vector<8x4xf32>, vector<4x800xf32>, vector<8x800xf32> -> vector<8x800xf32>
    %31 = arith.addf %26, %30 : vector<8x800xf32>
    %c6 = arith.constant 6 : index
    %c0_20 = arith.constant 0 : index
    %c0_21 = arith.constant 0 : index
    %32 = vector.load %arg1[%c6, %c0_20, %c0_21] : memref<9x8x4xf32, #tpu.memory_space<vmem>>, vector<1x8x4xf32>
    %33 = vector.shape_cast %32 : vector<1x8x4xf32> to vector<8x4xf32>
    %34 = vector.extract_strided_slice %0 {offsets = [0, 80], sizes = [4, 800], strides = [1, 1]} : vector<4x896xf32> to vector<4x800xf32>
    %cst_22 = arith.constant dense<0.000000e+00> : vector<8x800xf32>
    %35 = tpu.matmul %33, %34, %cst_22 {dimension_numbers = #tpu.dot_dimension_numbers<[1], [0], [0], [1], [0, 0, 1, 1], [], []>} : vector<8x4xf32>, vector<4x800xf32>, vector<8x800xf32> -> vector<8x800xf32>
    %36 = arith.addf %31, %35 : vector<8x800xf32>
    %c7 = arith.constant 7 : index
    %c0_23 = arith.constant 0 : index
    %c0_24 = arith.constant 0 : index
    %37 = vector.load %arg1[%c7, %c0_23, %c0_24] : memref<9x8x4xf32, #tpu.memory_space<vmem>>, vector<1x8x4xf32>
    %38 = vector.shape_cast %37 : vector<1x8x4xf32> to vector<8x4xf32>
    %39 = vector.extract_strided_slice %0 {offsets = [0, 82], sizes = [4, 800], strides = [1, 1]} : vector<4x896xf32> to vector<4x800xf32>
    %cst_25 = arith.constant dense<0.000000e+00> : vector<8x800xf32>
    %40 = tpu.matmul %38, %39, %cst_25 {dimension_numbers = #tpu.dot_dimension_numbers<[1], [0], [0], [1], [0, 0, 1, 1], [], []>} : vector<8x4xf32>, vector<4x800xf32>, vector<8x800xf32> -> vector<8x800xf32>
    %41 = arith.addf %36, %40 : vector<8x800xf32>
    %c8 = arith.constant 8 : index
    %c0_26 = arith.constant 0 : index
    %c0_27 = arith.constant 0 : index
    %42 = vector.load %arg1[%c8, %c0_26, %c0_27] : memref<9x8x4xf32, #tpu.memory_space<vmem>>, vector<1x8x4xf32>
    %43 = vector.shape_cast %42 : vector<1x8x4xf32> to vector<8x4xf32>
    %44 = vector.extract_strided_slice %0 {offsets = [0, 84], sizes = [4, 800], strides = [1, 1]} : vector<4x896xf32> to vector<4x800xf32>
    %cst_28 = arith.constant dense<0.000000e+00> : vector<8x800xf32>
    %45 = tpu.matmul %43, %44, %cst_28 {dimension_numbers = #tpu.dot_dimension_numbers<[1], [0], [0], [1], [0, 0, 1, 1], [], []>} : vector<8x4xf32>, vector<4x800xf32>, vector<8x800xf32> -> vector<8x800xf32>
    %46 = arith.addf %41, %45 : vector<8x800xf32>
    %c0_29 = arith.constant 0 : index
    %c0_30 = arith.constant 0 : index
    %47 = vector.load %arg3[%c0_29, %c0_30] : memref<1x800xf32, #tpu.memory_space<vmem>>, vector<1x800xf32>
    %48 = vector.broadcast %47 : vector<1x800xf32> to vector<8x800xf32>
    %49 = arith.mulf %46, %48 : vector<8x800xf32>
    %50 = arith.mulf %49, %49 : vector<8x800xf32>
    %51 = tpu.concatenate %49, %50 in 0 : vector<8x800xf32>, vector<8x800xf32> -> vector<16x800xf32>
    %cst_31 = arith.constant dense<0.000000e+00> : vector<16xf32>
    %52 = vector.multi_reduction <add>, %51, %cst_31 [1] : vector<16x800xf32> to vector<16xf32>
    %53 = vector.shape_cast %52 : vector<16xf32> to vector<16x1xf32>
    %54 = vector.extract_strided_slice %53 {offsets = [0, 0], sizes = [8, 1], strides = [1, 1]} : vector<16x1xf32> to vector<8x1xf32>
    %cst_32 = arith.constant 0.001953125 : f32
    %55 = vector.broadcast %cst_32 : f32 to vector<8x1xf32>
    %56 = arith.mulf %54, %55 : vector<8x1xf32>
    %57 = vector.extract_strided_slice %53 {offsets = [8, 0], sizes = [8, 1], strides = [1, 1]} : vector<16x1xf32> to vector<8x1xf32>
    %cst_33 = arith.constant 0.001953125 : f32
    %58 = vector.broadcast %cst_33 : f32 to vector<8x1xf32>
    %59 = arith.mulf %57, %58 : vector<8x1xf32>
    %60 = arith.mulf %56, %56 : vector<8x1xf32>
    %61 = arith.subf %59, %60 : vector<8x1xf32>
    %cst_34 = arith.constant 0.000000e+00 : f32
    %62 = vector.broadcast %cst_34 : f32 to vector<8x1xf32>
    %63 = arith.maximumf %61, %62 : vector<8x1xf32>
    %c0_35 = arith.constant 0 : index
    %c0_36 = arith.constant 0 : index
    %64 = vector.load %arg2[%c0_35, %c0_36] : memref<8x2xf32, #tpu.memory_space<vmem>>, vector<8x1xf32>
    %cst_37 = arith.constant 9.99999974E-6 : f32
    %65 = vector.broadcast %cst_37 : f32 to vector<8x1xf32>
    %66 = arith.addf %63, %65 : vector<8x1xf32>
    %67 = math.rsqrt %66 : vector<8x1xf32>
    %68 = arith.mulf %64, %67 : vector<8x1xf32>
    %c0_38 = arith.constant 0 : index
    %c1_39 = arith.constant 1 : index
    %69 = vector.load %arg2[%c0_38, %c1_39] : memref<8x2xf32, #tpu.memory_space<vmem>>, vector<8x1xf32>
    %70 = arith.mulf %56, %68 : vector<8x1xf32>
    %71 = arith.subf %69, %70 : vector<8x1xf32>
    %72 = vector.broadcast %68 : vector<8x1xf32> to vector<8x800xf32>
    %73 = arith.mulf %46, %72 : vector<8x800xf32>
    %74 = vector.broadcast %71 : vector<8x1xf32> to vector<8x800xf32>
    %75 = arith.addf %73, %74 : vector<8x800xf32>
    %cst_40 = arith.constant 0.000000e+00 : f32
    %76 = vector.broadcast %cst_40 : f32 to vector<8x800xf32>
    %77 = arith.maximumf %75, %76 : vector<8x800xf32>
    %c0_41 = arith.constant 0 : index
    %c0_42 = arith.constant 0 : index
    %78 = vector.load %arg4[%c0_41, %c0_42] : memref<8x800xf32, #tpu.memory_space<vmem>>, vector<8x800xf32>
    tpu.vector_store %arg4[%c0_41, %c0_42], %77 {strides = array<i32>} : memref<8x800xf32, #tpu.memory_space<vmem>>, vector<8x800xf32>,
    return
  }
}

</mosaic_0001>

<llo_original>
// kernel: aspp_forward.1
$region0: #{aspp_forward.1}
  #allocation0 [shape = 'u32[]', space=smem, size = 0x4, offset = 0x4, fixed_abs, tag = 'smem constant byte address 0x4 - core index']
  #allocation1 [shape = 'u32[144,128]{1,0:T(1,128)}', space=vmem, size = 0x12000, scoped, tag = 'internal scratch']
  %s0 = inlined_call_operand.vmem [shape: f32[4,896], index: 0, kind: input, shape index: {}]
  %s1 = inlined_call_operand.vmem [shape: f32[9,8,4], index: 1, kind: input, shape index: {}]
  %s2 = inlined_call_operand.vmem [shape: f32[8,2], index: 2, kind: input, shape index: {}]
  %s3 = inlined_call_operand.vmem [shape: f32[1,800], index: 3, kind: input, shape index: {}]
  %s4 = inlined_call_operand.vmem [shape: f32[8,800], index: 4, kind: output, shape index: {}]
  %s5 = sld [smem:[#allocation0]]
  $region26: #{aspp_forward.1} parent=0
    _
  %s7 = ssub.s32 1, %s5
  %s8 = scalar_select 0, %s7, %s5
  // Predicated region
  $region2: #{aspp_forward.1} parent=0 // pred_check
    _
  $region3: #{aspp_forward.1} parent=0 // pred_check_branch
    %10 = sbr.rel (0) target = $region5
  $region4: #{aspp_forward.1} parent=0 // pred_region
    _
  $region5: #{aspp_forward.1} parent=0 // pred_fallthru
    _
  // Predicated region
  $region6: #{aspp_forward.1} parent=0 // pred_check
    _
  $region7: #{aspp_forward.1} parent=0 // pred_check_branch
    %12 = sbr.rel (0) target = $region9
  $region8: #{aspp_forward.1} parent=0 // pred_region
    _
  $region9: #{aspp_forward.1} parent=0 // pred_fallthru
    _
  // Predicated region
  $region10: #{aspp_forward.1} parent=0 // pred_check
    _
  $region11: #{aspp_forward.1} parent=0 // pred_check_branch
    %14 = sbr.rel (0) target = $region13
  $region12: #{aspp_forward.1} parent=0 // pred_region
    _
  $region13: #{aspp_forward.1} parent=0 // pred_fallthru
    _
  // Predicated region
  $region14: #{aspp_forward.1} parent=0 // pred_check
    _
  $region15: #{aspp_forward.1} parent=0 // pred_check_branch
    %16 = sbr.rel (0) target = $region17
  $region16: #{aspp_forward.1} parent=0 // pred_region
    _
  $region17: #{aspp_forward.1} parent=0 // pred_fallthru
    _
  %v17 = vld [vmem:[%s0] sm:$0xff]
  %v18 = vld [vmem:[%s0 + $0x8] sm:$0xff]
  %v19 = vld [vmem:[%s0 + $0x10] sm:$0xff]
  %v20 = vld [vmem:[%s0 + $0x18] sm:$0xf]
  %v21 = vld [vmem:[%s1] sm:$0xff]
  %s22 = scalar_lea.vmem %s1, 8
  %v23 = vld [vmem:[%s22] sm:$0xff]
  %v28 = vcombine.high %v17, %v17
  %v29 = vcombine.high %v18, %v18
  %v30 = vcombine.high %v19, %v19
  %31 = vrot.lane.b32.xlu0 %v17, 126
  %v32 = vpop.permute.xlu0 %31
  %33 = vrot.lane.b32.xlu0 %v28, 126
  %v34 = vpop.permute.xlu0 %33
  %35 = vrot.lane.b32.xlu0 %v18, 126
  %v36 = vpop.permute.xlu0 %35
  %37 = vrot.lane.b32.xlu0 %v29, 126
  %v38 = vpop.permute.xlu0 %37
  %39 = vrot.lane.b32.xlu0 %v19, 126
  %v40 = vpop.permute.xlu0 %39
  %41 = vrot.lane.b32.xlu0 %v30, 126
  %v42 = vpop.permute.xlu0 %41
  %43 = vrot.lane.b32.xlu0 %v20, 126
  %v44 = vpop.permute.xlu0 %43
  %vm45 = vcmask 1031168
  %v46 = vsel %vm45, %v32, %v34
  %v47 = vsel %vm45, %v34, %v36
  %v48 = vsel %vm45, %v36, %v38
  %v49 = vsel %vm45, %v38, %v40
  %v50 = vsel %vm45, %v40, %v42
  %v51 = vsel %vm45, %v42, %v44
  %vm52 = vcmask 31744
  %v54 = vsel %vm52, %v23, 0
  %vm56 = vcmask 1043456
  %v57 = vsel %vm56, %v46, 0
  %v59 = vsel %vm56, %v47, 0
  %v61 = vsel %vm56, %v48, 0
  %v63 = vsel %vm56, %v49, 0
  %v65 = vsel %vm56, %v50, 0
  %v67 = vsel %vm56, %v51, 0
  %v69 = vsel %vm56, %v44, 0
  %71 = vmatprep.subr.mxu0 %v59
  %72 = vmatpush1.msra.mxu0 %v57
  %73 = vmatprep.subr.mxu0 0.0
  %74 = vmatpush1.msra.mxu0 0.0
  %75 = vmatprep.subr.mxu0 0.0
  %76 = vmatpush1.msra.mxu0 0.0
  %77 = vmatprep.subr.mxu0 0.0
  %78 = vmatpush1.msra.mxu0 0.0
  %79 = vmatprep.subr.mxu0 0.0
  %80 = vmatpush1.msra.mxu0 0.0
  %81 = vmatprep.subr.mxu0 0.0
  %82 = vmatpush1.msra.mxu0 0.0
  %83 = vmatprep.subr.mxu0 0.0
  %84 = vmatpush1.msra.mxu0 0.0
  %85 = vmatprep.subr.mxu0 0.0
  %86 = vmatpush1.msra.mxu0 0.0
  %87 = vmatprep.subr.mxu0 0.0
  %88 = vmatpush1.msra.mxu0 0.0
  %89 = vmatprep.subr.mxu0 0.0
  %90 = vmatpush1.msra.mxu0 0.0
  %91 = vmatprep.subr.mxu0 0.0
  %92 = vmatpush1.msra.mxu0 0.0
  %93 = vmatprep.subr.mxu0 0.0
  %94 = vmatpush1.msra.mxu0 0.0
  %95 = vmatprep.subr.mxu0 0.0
  %96 = vmatpush1.msra.mxu0 0.0
  %97 = vmatprep.subr.mxu0 0.0
  %98 = vmatpush1.msra.mxu0 0.0
  %99 = vmatprep.subr.mxu0 0.0
  %100 = vmatpush1.msra.mxu0 0.0
  %101 = vmatprep.subr.mxu0 0.0
  %102 = vmatpush1.msra.mxu0 0.0
  %103 = vmatprep.subr.mxu0 0.0
  %104 = vmatpush1.msra.mxu0 0.0
  %105 = vmatprep.subr.mxu0 0.0
  %106 = vmatpush1.msra.mxu0 0.0
  %107 = vmatprep.subr.mxu0 0.0
  %108 = vmatpush1.msra.mxu0 0.0
  %109 = vmatprep.subr.mxu0 0.0
  %110 = vmatpush1.msra.mxu0 0.0
  %111 = vmatprep.subr.mxu0 0.0
  %112 = vmatpush1.msra.mxu0 0.0
  %113 = vmatprep.subr.mxu0 0.0
  %114 = vmatpush1.msra.mxu0 0.0
  %115 = vmatprep.subr.mxu0 0.0
  %116 = vmatpush1.msra.mxu0 0.0
  %117 = vmatprep.subr.mxu0 0.0
  %118 = vmatpush1.msra.mxu0 0.0
  %119 = vmatprep.subr.mxu0 0.0
  %120 = vmatpush1.msra.mxu0 0.0
  %121 = vmatprep.subr.mxu0 0.0
  %122 = vmatpush1.msra.mxu0 0.0
  %123 = vmatprep.subr.mxu0 0.0
  %124 = vmatpush1.msra.mxu0 0.0
  %125 = vmatprep.subr.mxu0 0.0
  %126 = vmatpush1.msra.mxu0 0.0
  %127 = vmatprep.subr.mxu0 0.0
  %128 = vmatpush1.msra.mxu0 0.0
  %129 = vmatprep.subr.mxu0 0.0
  %130 = vmatpush1.msra.mxu0 0.0
  %131 = vmatprep.subr.mxu0 0.0
  %132 = vmatpush1.msra.mxu0 0.0
  %133 = vmatprep.subr.mxu0 0.0
  %134 = vmatpush1.msra.mxu0 0.0
  %135 = vmatprep.mubr.f32.mxu0 0.0
  %136 = vmatmul.mubr.f32.gmra.mrb[0].mxu0 %v54
  %v137 = vpop.f32.mrb[0].mxu0
  %v138 = vadd.f32 0.0, %v137
  %v139 = vpop.f32.mrb[0].mxu0
  %v140 = vadd.f32 0.0, %v139
  %141 = vdwg.mxu0
  %142 = vmatprep.subr.mxu0 %v63
  %143 = vmatpush1.msra.mxu0 %v61
  %144 = vmatprep.subr.mxu0 0.0
  %145 = vmatpush1.msra.mxu0 0.0
  %146 = vmatprep.subr.mxu0 0.0
  %147 = vmatpush1.msra.mxu0 0.0
  %148 = vmatprep.subr.mxu0 0.0
  %149 = vmatpush1.msra.mxu0 0.0
  %150 = vmatprep.subr.mxu0 0.0
  %151 = vmatpush1.msra.mxu0 0.0
  %152 = vmatprep.subr.mxu0 0.0
  %153 = vmatpush1.msra.mxu0 0.0
  %154 = vmatprep.subr.mxu0 0.0
  %155 = vmatpush1.msra.mxu0 0.0
  %156 = vmatprep.subr.mxu0 0.0
  %157 = vmatpush1.msra.mxu0 0.0
  %158 = vmatprep.subr.mxu0 0.0
  %159 = vmatpush1.msra.mxu0 0.0
  %160 = vmatprep.subr.mxu0 0.0
  %161 = vmatpush1.msra.mxu0 0.0
  %162 = vmatprep.subr.mxu0 0.0
  %163 = vmatpush1.msra.mxu0 0.0
  %164 = vmatprep.subr.mxu0 0.0
  %165 = vmatpush1.msra.mxu0 0.0
  %166 = vmatprep.subr.mxu0 0.0
  %167 = vmatpush1.msra.mxu0 0.0
  %168 = vmatprep.subr.mxu0 0.0
  %169 = vmatpush1.msra.mxu0 0.0
  %170 = vmatprep.subr.mxu0 0.0
  %171 = vmatpush1.msra.mxu0 0.0
  %172 = vmatprep.subr.mxu0 0.0
  %173 = vmatpush1.msra.mxu0 0.0
  %174 = vmatprep.subr.mxu0 0.0
  %175 = vmatpush1.msra.mxu0 0.0
  %176 = vmatprep.subr.mxu0 0.0
  %177 = vmatpush1.msra.mxu0 0.0
  %178 = vmatprep.subr.mxu0 0.0
  %179 = vmatpush1.msra.mxu0 0.0
  %180 = vmatprep.subr.mxu0 0.0
  %181 = vmatpush1.msra.mxu0 0.0
  %182 = vmatprep.subr.mxu0 0.0
  %183 = vmatpush1.msra.mxu0 0.0
  %184 = vmatprep.subr.mxu0 0.0
  %185 = vmatpush1.msra.mxu0 0.0
  %186 = vmatprep.subr.mxu0 0.0
  %187 = vmatpush1.msra.mxu0 0.0
  %188 = vmatprep.subr.mxu0 0.0
  %189 = vmatpush1.msra.mxu0 0.0
  %190 = vmatprep.subr.mxu0 0.0
  %191 = vmatpush1.msra.mxu0 0.0
  %192 = vmatprep.subr.mxu0 0.0
  %193 = vmatpush1.msra.mxu0 0.0
  %194 = vmatprep.subr.mxu0 0.0
  %195 = vmatpush1.msra.mxu0 0.0
  %196 = vmatprep.subr.mxu0 0.0
  %197 = vmatpush1.msra.mxu0 0.0
  %198 = vmatprep.subr.mxu0 0.0
  %199 = vmatpush1.msra.mxu0 0.0
  %200 = vmatprep.subr.mxu0 0.0
  %201 = vmatpush1.msra.mxu0 0.0
  %202 = vmatprep.subr.mxu0 0.0
  %203 = vmatpush1.msra.mxu0 0.0
  %204 = vmatprep.subr.mxu0 0.0
  %205 = vmatpush1.msra.mxu0 0.0
  %206 = vmatprep.mubr.f32.mxu0 0.0
  %207 = vmatmul.mubr.f32.gmra.mrb[0].mxu0 %v54
  %v208 = vpop.f32.mrb[0].mxu0
  %v209 = vadd.f32 0.0, %v208
  %v210 = vpop.f32.mrb[0].mxu0
  %v211 = vadd.f32 0.0, %v210
  %212 = vdwg.mxu0
  %213 = vmatprep.subr.mxu0 %v67
  %214 = vmatpush1.msra.mxu0 %v65
  %215 = vmatprep.subr.mxu0 0.0
  %216 = vmatpush1.msra.mxu0 0.0
  %217 = vmatprep.subr.mxu0 0.0
  %218 = vmatpush1.msra.mxu0 0.0
  %219 = vmatprep.subr.mxu0 0.0
  %220 = vmatpush1.msra.mxu0 0.0
  %221 = vmatprep.subr.mxu0 0.0
  %222 = vmatpush1.msra.mxu0 0.0
  %223 = vmatprep.subr.mxu0 0.0
  %224 = vmatpush1.msra.mxu0 0.0
  %225 = vmatprep.subr.mxu0 0.0
  %226 = vmatpush1.msra.mxu0 0.0
  %227 = vmatprep.subr.mxu0 0.0
  %228 = vmatpush1.msra.mxu0 0.0
  %229 = vmatprep.subr.mxu0 0.0
  %230 = vmatpush1.msra.mxu0 0.0
  %231 = vmatprep.subr.mxu0 0.0
  %232 = vmatpush1.msra.mxu0 0.0
  %233 = vmatprep.subr.mxu0 0.0
  %234 = vmatpush1.msra.mxu0 0.0
  %235 = vmatprep.subr.mxu0 0.0
  %236 = vmatpush1.msra.mxu0 0.0
  %237 = vmatprep.subr.mxu0 0.0
  %238 = vmatpush1.msra.mxu0 0.0
  %239 = vmatprep.subr.mxu0 0.0
  %240 = vmatpush1.msra.mxu0 0.0
  %241 = vmatprep.subr.mxu0 0.0
  %242 = vmatpush1.msra.mxu0 0.0
  %243 = vmatprep.subr.mxu0 0.0
  %244 = vmatpush1.msra.mxu0 0.0
  %245 = vmatprep.subr.mxu0 0.0
  %246 = vmatpush1.msra.mxu0 0.0
  %247 = vmatprep.subr.mxu0 0.0
  %248 = vmatpush1.msra.mxu0 0.0
  %249 = vmatprep.subr.mxu0 0.0
  %250 = vmatpush1.msra.mxu0 0.0
  %251 = vmatprep.subr.mxu0 0.0
  %252 = vmatpush1.msra.mxu0 0.0
  %253 = vmatprep.subr.mxu0 0.0
  %254 = vmatpush1.msra.mxu0 0.0
  %255 = vmatprep.subr.mxu0 0.0
  %256 = vmatpush1.msra.mxu0 0.0
  %257 = vmatprep.subr.mxu0 0.0
  %258 = vmatpush1.msra.mxu0 0.0
  %259 = vmatprep.subr.mxu0 0.0
  %260 = vmatpush1.msra.mxu0 0.0
  %261 = vmatprep.subr.mxu0 0.0
  %262 = vmatpush1.msra.mxu0 0.0
  %263 = vmatprep.subr.mxu0 0.0
  %264 = vmatpush1.msra.mxu0 0.0
  %265 = vmatprep.subr.mxu0 0.0
  %266 = vmatpush1.msra.mxu0 0.0
  %267 = vmatprep.subr.mxu0 0.0
  %268 = vmatpush1.msra.mxu0 0.0
  %269 = vmatprep.subr.mxu0 0.0
  %270 = vmatpush1.msra.mxu0 0.0
  %271 = vmatprep.subr.mxu0 0.0
  %272 = vmatpush1.msra.mxu0 0.0
  %273 = vmatprep.subr.mxu0 0.0
  %274 = vmatpush1.msra.mxu0 0.0
  %275 = vmatprep.subr.mxu0 0.0
  %276 = vmatpush1.msra.mxu0 0.0
  %277 = vmatprep.mubr.f32.mxu0 0.0
  %278 = vmatmul.mubr.f32.gmra.mrb[0].mxu0 %v54
  %v279 = vpop.f32.mrb[0].mxu0
  %v280 = vadd.f32 0.0, %v279
  %v281 = vpop.f32.mrb[0].mxu0
  %v282 = vadd.f32 0.0, %v281
  %283 = vdwg.mxu0
  %284 = vmatprep.subr.mxu0 0.0
  %285 = vmatpush1.msra.mxu0 %v69
  %286 = vmatprep.subr.mxu0 0.0
  %287 = vmatpush1.msra.mxu0 0.0
  %288 = vmatprep.subr.mxu0 0.0
  %289 = vmatpush1.msra.mxu0 0.0
  %290 = vmatprep.subr.mxu0 0.0
  %291 = vmatpush1.msra.mxu0 0.0
  %292 = vmatprep.subr.mxu0 0.0
  %293 = vmatpush1.msra.mxu0 0.0
  %294 = vmatprep.subr.mxu0 0.0
  %295 = vmatpush1.msra.mxu0 0.0
  %296 = vmatprep.subr.mxu0 0.0
  %297 = vmatpush1.msra.mxu0 0.0
  %298 = vmatprep.subr.mxu0 0.0
  %299 = vmatpush1.msra.mxu0 0.0
  %300 = vmatprep.subr.mxu0 0.0
  %301 = vmatpush1.msra.mxu0 0.0
  %302 = vmatprep.subr.mxu0 0.0
  %303 = vmatpush1.msra.mxu0 0.0
  %304 = vmatprep.subr.mxu0 0.0
  %305 = vmatpush1.msra.mxu0 0.0
  %306 = vmatprep.subr.mxu0 0.0
  %307 = vmatpush1.msra.mxu0 0.0
  %308 = vmatprep.subr.mxu0 0.0
  %309 = vmatpush1.msra.mxu0 0.0
  %310 = vmatprep.subr.mxu0 0.0
  %311 = vmatpush1.msra.mxu0 0.0
  %312 = vmatprep.subr.mxu0 0.0
  %313 = vmatpush1.msra.mxu0 0.0
  %314 = vmatprep.subr.mxu0 0.0
  %315 = vmatpush1.msra.mxu0 0.0
  %316 = vmatprep.subr.mxu0 0.0
  %317 = vmatpush1.msra.mxu0 0.0
  %318 = vmatprep.subr.mxu0 0.0
  %319 = vmatpush1.msra.mxu0 0.0
  %320 = vmatprep.subr.mxu0 0.0
  %321 = vmatpush1.msra.mxu0 0.0
  %322 = vmatprep.subr.mxu0 0.0
  %323 = vmatpush1.msra.mxu0 0.0
  %324 = vmatprep.subr.mxu0 0.0
  %325 = vmatpush1.msra.mxu0 0.0
  %326 = vmatprep.subr.mxu0 0.0
  %327 = vmatpush1.msra.mxu0 0.0
  %328 = vmatprep.subr.mxu0 0.0
  %329 = vmatpush1.msra.mxu0 0.0
  %330 = vmatprep.subr.mxu0 0.0
  %331 = vmatpush1.msra.mxu0 0.0
  %332 = vmatprep.subr.mxu0 0.0
  %333 = vmatpush1.msra.mxu0 0.0
  %334 = vmatprep.subr.mxu0 0.0
  %335 = vmatpush1.msra.mxu0 0.0
  %336 = vmatprep.subr.mxu0 0.0
  %337 = vmatpush1.msra.mxu0 0.0
  %338 = vmatprep.subr.mxu0 0.0
  %339 = vmatpush1.msra.mxu0 0.0
  %340 = vmatprep.subr.mxu0 0.0
  %341 = vmatpush1.msra.mxu0 0.0
  %342 = vmatprep.subr.mxu0 0.0
  %343 = vmatpush1.msra.mxu0 0.0
  %344 = vmatprep.subr.mxu0 0.0
  %345 = vmatpush1.msra.mxu0 0.0
  %346 = vmatprep.subr.mxu0 0.0
  %347 = vmatpush1.msra.mxu0 0.0
  %348 = vmatprep.mubr.f32.mxu0 0.0
  %349 = vmatmul.mubr.f32.gmra.mrb[0].mxu0 %v54
  %v350 = vpop.f32.mrb[0].mxu0
  %v351 = vadd.f32 0.0, %v350
  %v352 = vpop.f32.mrb[0].mxu0
  %353 = vdwg.mxu0
  %v355 = vsel %vm52, %v21, 0
  %v357 = vsel %vm56, %v17, 0
  %v359 = vsel %vm56, %v28, 0
  %v361 = vsel %vm56, %v18, 0
  %v363 = vsel %vm56, %v29, 0
  %v365 = vsel %vm56, %v19, 0
  %v367 = vsel %vm56, %v30, 0
  %v369 = vsel %vm56, %v20, 0
  %371 = vmatprep.subr.mxu0 %v359
  %372 = vmatpush1.msra.mxu0 %v357
  %373 = vmatprep.subr.mxu0 0.0
  %374 = vmatpush1.msra.mxu0 0.0
  %375 = vmatprep.subr.mxu0 0.0
  %376 = vmatpush1.msra.mxu0 0.0
  %377 = vmatprep.subr.mxu0 0.0
  %378 = vmatpush1.msra.mxu0 0.0
  %379 = vmatprep.subr.mxu0 0.0
  %380 = vmatpush1.msra.mxu0 0.0
  %381 = vmatprep.subr.mxu0 0.0
  %382 = vmatpush1.msra.mxu0 0.0
  %383 = vmatprep.subr.mxu0 0.0
  %384 = vmatpush1.msra.mxu0 0.0
  %385 = vmatprep.subr.mxu0 0.0
  %386 = vmatpush1.msra.mxu0 0.0
  %387 = vmatprep.subr.mxu0 0.0
  %388 = vmatpush1.msra.mxu0 0.0
  %389 = vmatprep.subr.mxu0 0.0
  %390 = vmatpush1.msra.mxu0 0.0
  %391 = vmatprep.subr.mxu0 0.0
  %392 = vmatpush1.msra.mxu0 0.0
  %393 = vmatprep.subr.mxu0 0.0
  %394 = vmatpush1.msra.mxu0 0.0
  %395 = vmatprep.subr.mxu0 0.0
  %396 = vmatpush1.msra.mxu0 0.0
  %397 = vmatprep.subr.mxu0 0.0
  %398 = vmatpush1.msra.mxu0 0.0
  %399 = vmatprep.subr.mxu0 0.0
  %400 = vmatpush1.msra.mxu0 0.0
  %401 = vmatprep.subr.mxu0 0.0
  %402 = vmatpush1.msra.mxu0 0.0
  %403 = vmatprep.subr.mxu0 0.0
  %404 = vmatpush1.msra.mxu0 0.0
  %405 = vmatprep.subr.mxu0 0.0
  %406 = vmatpush1.msra.mxu0 0.0
  %407 = vmatprep.subr.mxu0 0.0
  %408 = vmatpush1.msra.mxu0 0.0
  %409 = vmatprep.subr.mxu0 0.0
  %410 = vmatpush1.msra.mxu0 0.0
  %411 = vmatprep.subr.mxu0 0.0
  %412 = vmatpush1.msra.mxu0 0.0
  %413 = vmatprep.subr.mxu0 0.0
  %414 = vmatpush1.msra.mxu0 0.0
  %415 = vmatprep.subr.mxu0 0.0
  %416 = vmatpush1.msra.mxu0 0.0
  %417 = vmatprep.subr.mxu0 0.0
  %418 = vmatpush1.msra.mxu0 0.0
  %419 = vmatprep.subr.mxu0 0.0
  %420 = vmatpush1.msra.mxu0 0.0
  %421 = vmatprep.subr.mxu0 0.0
  %422 = vmatpush1.msra.mxu0 0.0
  %423 = vmatprep.subr.mxu0 0.0
  %424 = vmatpush1.msra.mxu0 0.0
  %425 = vmatprep.subr.mxu0 0.0
  %426 = vmatpush1.msra.mxu0 0.0
  %427 = vmatprep.subr.mxu0 0.0
  %428 = vmatpush1.msra.mxu0 0.0
  %429 = vmatprep.subr.mxu0 0.0
  %430 = vmatpush1.msra.mxu0 0.0
  %431 = vmatprep.subr.mxu0 0.0
  %432 = vmatpush1.msra.mxu0 0.0
  %433 = vmatprep.subr.mxu0 0.0
  %434 = vmatpush1.msra.mxu0 0.0
  %435 = vmatprep.mubr.f32.mxu0 0.0
  %436 = vmatmul.mubr.f32.gmra.mrb[0].mxu0 %v355
  %v437 = vpop.f32.mrb[0].mxu0
  %v438 = vadd.f32 %v138, %v437
  %v439 = vpop.f32.mrb[0].mxu0
  %v440 = vadd.f32 %v140, %v439
  %441 = vdwg.mxu0
  %442 = vmatprep.subr.mxu0 %v363
  %443 = vmatpush1.msra.mxu0 %v361
  %444 = vmatprep.subr.mxu0 0.0
  %445 = vmatpush1.msra.mxu0 0.0
  %446 = vmatprep.subr.mxu0 0.0
  %447 = vmatpush1.msra.mxu0 0.0
  %448 = vmatprep.subr.mxu0 0.0
  %449 = vmatpush1.msra.mxu0 0.0
  %450 = vmatprep.subr.mxu0 0.0
  %451 = vmatpush1.msra.mxu0 0.0
  %452 = vmatprep.subr.mxu0 0.0
  %453 = vmatpush1.msra.mxu0 0.0
  %454 = vmatprep.subr.mxu0 0.0
  %455 = vmatpush1.msra.mxu0 0.0
  %456 = vmatprep.subr.mxu0 0.0
  %457 = vmatpush1.msra.mxu0 0.0
  %458 = vmatprep.subr.mxu0 0.0
  %459 = vmatpush1.msra.mxu0 0.0
  %460 = vmatprep.subr.mxu0 0.0
  %461 = vmatpush1.msra.mxu0 0.0
  %462 = vmatprep.subr.mxu0 0.0
  %463 = vmatpush1.msra.mxu0 0.0
  %464 = vmatprep.subr.mxu0 0.0
  %465 = vmatpush1.msra.mxu0 0.0
  %466 = vmatprep.subr.mxu0 0.0
  %467 = vmatpush1.msra.mxu0 0.0
  %468 = vmatprep.subr.mxu0 0.0
  %469 = vmatpush1.msra.mxu0 0.0
  %470 = vmatprep.subr.mxu0 0.0
  %471 = vmatpush1.msra.mxu0 0.0
  %472 = vmatprep.subr.mxu0 0.0
  %473 = vmatpush1.msra.mxu0 0.0
  %474 = vmatprep.subr.mxu0 0.0
  %475 = vmatpush1.msra.mxu0 0.0
  %476 = vmatprep.subr.mxu0 0.0
  %477 = vmatpush1.msra.mxu0 0.0
  %478 = vmatprep.subr.mxu0 0.0
  %479 = vmatpush1.msra.mxu0 0.0
  %480 = vmatprep.subr.mxu0 0.0
  %481 = vmatpush1.msra.mxu0 0.0
  %482 = vmatprep.subr.mxu0 0.0
  %483 = vmatpush1.msra.mxu0 0.0
  %484 = vmatprep.subr.mxu0 0.0
  %485 = vmatpush1.msra.mxu0 0.0
  %486 = vmatprep.subr.mxu0 0.0
  %487 = vmatpush1.msra.mxu0 0.0
  %488 = vmatprep.subr.mxu0 0.0
  %489 = vmatpush1.msra.mxu0 0.0
  %490 = vmatprep.subr.mxu0 0.0
  %491 = vmatpush1.msra.mxu0 0.0
  %492 = vmatprep.subr.mxu0 0.0
  %493 = vmatpush1.msra.mxu0 0.0
  %494 = vmatprep.subr.mxu0 0.0
  %495 = vmatpush1.msra.mxu0 0.0
  %496 = vmatprep.subr.mxu0 0.0
  %497 = vmatpush1.msra.mxu0 0.0
  %498 = vmatprep.subr.mxu0 0.0
  %499 = vmatpush1.msra.mxu0 0.0
  %500 = vmatprep.subr.mxu0 0.0
  %501 = vmatpush1.msra.mxu0 0.0
  %502 = vmatprep.subr.mxu0 0.0
  %503 = vmatpush1.msra.mxu0 0.0
  %504 = vmatprep.subr.mxu0 0.0
  %505 = vmatpush1.msra.mxu0 0.0
  %506 = vmatprep.mubr.f32.mxu0 0.0
  %507 = vmatmul.mubr.f32.gmra.mrb[0].mxu0 %v355
  %v508 = vpop.f32.mrb[0].mxu0
  %v509 = vadd.f32 %v209, %v508
  %v510 = vpop.f32.mrb[0].mxu0
  %v511 = vadd.f32 %v211, %v510
  %512 = vdwg.mxu0
  %513 = vmatprep.subr.mxu0 %v367
  %514 = vmatpush1.msra.mxu0 %v365
  %515 = vmatprep.subr.mxu0 0.0
  %516 = vmatpush1.msra.mxu0 0.0
  %517 = vmatprep.subr.mxu0 0.0
  %518 = vmatpush1.msra.mxu0 0.0
  %519 = vmatprep.subr.mxu0 0.0
  %520 = vmatpush1.msra.mxu0 0.0
  %521 = vmatprep.subr.mxu0 0.0
  %522 = vmatpush1.msra.mxu0 0.0
  %523 = vmatprep.subr.mxu0 0.0
  %524 = vmatpush1.msra.mxu0 0.0
  %525 = vmatprep.subr.mxu0 0.0
  %526 = vmatpush1.msra.mxu0 0.0
  %527 = vmatprep.subr.mxu0 0.0
  %528 = vmatpush1.msra.mxu0 0.0
  %529 = vmatprep.subr.mxu0 0.0
  %530 = vmatpush1.msra.mxu0 0.0
  %531 = vmatprep.subr.mxu0 0.0
  %532 = vmatpush1.msra.mxu0 0.0
  %533 = vmatprep.subr.mxu0 0.0
  %534 = vmatpush1.msra.mxu0 0.0
  %535 = vmatprep.subr.mxu0 0.0
  %536 = vmatpush1.msra.mxu0 0.0
  %537 = vmatprep.subr.mxu0 0.0
  %538 = vmatpush1.msra.mxu0 0.0
  %539 = vmatprep.subr.mxu0 0.0
  %540 = vmatpush1.msra.mxu0 0.0
  %541 = vmatprep.subr.mxu0 0.0
  %542 = vmatpush1.msra.mxu0 0.0
  %543 = vmatprep.subr.mxu0 0.0
  %544 = vmatpush1.msra.mxu0 0.0
  %545 = vmatprep.subr.mxu0 0.0
  %546 = vmatpush1.msra.mxu0 0.0
  %547 = vmatprep.subr.mxu0 0.0
  %548 = vmatpush1.msra.mxu0 0.0
  %549 = vmatprep.subr.mxu0 0.0
  %550 = vmatpush1.msra.mxu0 0.0
  %551 = vmatprep.subr.mxu0 0.0
  %552 = vmatpush1.msra.mxu0 0.0
  %553 = vmatprep.subr.mxu0 0.0
  %554 = vmatpush1.msra.mxu0 0.0
  %555 = vmatprep.subr.mxu0 0.0
  %556 = vmatpush1.msra.mxu0 0.0
  %557 = vmatprep.subr.mxu0 0.0
  %558 = vmatpush1.msra.mxu0 0.0
  %559 = vmatprep.subr.mxu0 0.0
  %560 = vmatpush1.msra.mxu0 0.0
  %561 = vmatprep.subr.mxu0 0.0
  %562 = vmatpush1.msra.mxu0 0.0
  %563 = vmatprep.subr.mxu0 0.0
  %564 = vmatpush1.msra.mxu0 0.0
  %565 = vmatprep.subr.mxu0 0.0
  %566 = vmatpush1.msra.mxu0 0.0
  %567 = vmatprep.subr.mxu0 0.0
  %568 = vmatpush1.msra.mxu0 0.0
  %569 = vmatprep.subr.mxu0 0.0
  %570 = vmatpush1.msra.mxu0 0.0
  %571 = vmatprep.subr.mxu0 0.0
  %572 = vmatpush1.msra.mxu0 0.0
  %573 = vmatprep.subr.mxu0 0.0
  %574 = vmatpush1.msra.mxu0 0.0
  %575 = vmatprep.subr.mxu0 0.0
  %576 = vmatpush1.msra.mxu0 0.0
  %577 = vmatprep.mubr.f32.mxu0 0.0
  %578 = vmatmul.mubr.f32.gmra.mrb[0].mxu0 %v355
  %v579 = vpop.f32.mrb[0].mxu0
  %v580 = vadd.f32 %v280, %v579
  %v581 = vpop.f32.mrb[0].mxu0
  %v582 = vadd.f32 %v282, %v581
  %583 = vdwg.mxu0
  %584 = vmatprep.subr.mxu0 0.0
  %585 = vmatpush1.msra.mxu0 %v369
  %586 = vmatprep.subr.mxu0 0.0
  %587 = vmatpush1.msra.mxu0 0.0
  %588 = vmatprep.subr.mxu0 0.0
  %589 = vmatpush1.msra.mxu0 0.0
  %590 = vmatprep.subr.mxu0 0.0
  %591 = vmatpush1.msra.mxu0 0.0
  %592 = vmatprep.subr.mxu0 0.0
  %593 = vmatpush1.msra.mxu0 0.0
  %594 = vmatprep.subr.mxu0 0.0
  %595 = vmatpush1.msra.mxu0 0.0
  %596 = vmatprep.subr.mxu0 0.0
  %597 = vmatpush1.msra.mxu0 0.0
  %598 = vmatprep.subr.mxu0 0.0
  %599 = vmatpush1.msra.mxu0 0.0
  %600 = vmatprep.subr.mxu0 0.0
  %601 = vmatpush1.msra.mxu0 0.0
  %602 = vmatprep.subr.mxu0 0.0
  %603 = vmatpush1.msra.mxu0 0.0
  %604 = vmatprep.subr.mxu0 0.0
  %605 = vmatpush1.msra.mxu0 0.0
  %606 = vmatprep.subr.mxu0 0.0
  %607 = vmatpush1.msra.mxu0 0.0
  %608 = vmatprep.subr.mxu0 0.0
  %609 = vmatpush1.msra.mxu0 0.0
  %610 = vmatprep.subr.mxu0 0.0
  %611 = vmatpush1.msra.mxu0 0.0
  %612 = vmatprep.subr.mxu0 0.0
  %613 = vmatpush1.msra.mxu0 0.0
  %614 = vmatprep.subr.mxu0 0.0
  %615 = vmatpush1.msra.mxu0 0.0
  %616 = vmatprep.subr.mxu0 0.0
  %617 = vmatpush1.msra.mxu0 0.0
  %618 = vmatprep.subr.mxu0 0.0
  %619 = vmatpush1.msra.mxu0 0.0
  %620 = vmatprep.subr.mxu0 0.0
  %621 = vmatpush1.msra.mxu0 0.0
  %622 = vmatprep.subr.mxu0 0.0
  %623 = vmatpush1.msra.mxu0 0.0
  %624 = vmatprep.subr.mxu0 0.0
  %625 = vmatpush1.msra.mxu0 0.0
  %626 = vmatprep.subr.mxu0 0.0
  %627 = vmatpush1.msra.mxu0 0.0
  %628 = vmatprep.subr.mxu0 0.0
  %629 = vmatpush1.msra.mxu0 0.0
  %630 = vmatprep.subr.mxu0 0.0
  %631 = vmatpush1.msra.mxu0 0.0
  %632 = vmatprep.subr.mxu0 0.0
  %633 = vmatpush1.msra.mxu0 0.0
  %634 = vmatprep.subr.mxu0 0.0
  %635 = vmatpush1.msra.mxu0 0.0
  %636 = vmatprep.subr.mxu0 0.0
  %637 = vmatpush1.msra.mxu0 0.0
  %638 = vmatprep.subr.mxu0 0.0
  %639 = vmatpush1.msra.mxu0 0.0
  %640 = vmatprep.subr.mxu0 0.0
  %641 = vmatpush1.msra.mxu0 0.0
  %642 = vmatprep.subr.mxu0 0.0
  %643 = vmatpush1.msra.mxu0 0.0
  %644 = vmatprep.subr.mxu0 0.0
  %645 = vmatpush1.msra.mxu0 0.0
  %646 = vmatprep.subr.mxu0 0.0
  %647 = vmatpush1.msra.mxu0 0.0
  %648 = vmatprep.mubr.f32.mxu0 0.0
  %649 = vmatmul.mubr.f32.gmra.mrb[0].mxu0 %v355
  %v650 = vpop.f32.mrb[0].mxu0
  %v651 = vadd.f32 %v351, %v650
  %v652 = vpop.f32.mrb[0].mxu0
  %653 = vdwg.mxu0
  %s654 = scalar_lea.vmem %s1, 16
  %v655 = vld [vmem:[%s654] sm:$0xff]
  %656 = vrot.lane.b32.xlu0 %v17, 124
  %v657 = vpop.permute.xlu0 %656
  %658 = vrot.lane.b32.xlu0 %v28, 124
  %v659 = vpop.permute.xlu0 %658
  %660 = vrot.lane.b32.xlu0 %v18, 124
  %v661 = vpop.permute.xlu0 %660
  %662 = vrot.lane.b32.xlu0 %v29, 124
  %v663 = vpop.permute.xlu0 %662
  %664 = vrot.lane.b32.xlu0 %v19, 124
  %v665 = vpop.permute.xlu0 %664
  %666 = vrot.lane.b32.xlu0 %v30, 124
  %v667 = vpop.permute.xlu0 %666
  %668 = vrot.lane.b32.xlu0 %v20, 124
  %v669 = vpop.permute.xlu0 %668
  %vm670 = vcmask 1014784
  %v671 = vsel %vm670, %v657, %v659
  %v672 = vsel %vm670, %v659, %v661
  %v673 = vsel %vm670, %v661, %v663
  %v674 = vsel %vm670, %v663, %v665
  %v675 = vsel %vm670, %v665, %v667
  %v676 = vsel %vm670, %v667, %v669
  %v678 = vsel %vm52, %v655, 0
  %v680 = vsel %vm56, %v671, 0
  %v682 = vsel %vm56, %v672, 0
  %v684 = vsel %vm56, %v673, 0
  %v686 = vsel %vm56, %v674, 0
  %v688 = vsel %vm56, %v675, 0
  %v690 = vsel %vm56, %v676, 0
  %v692 = vsel %vm56, %v669, 0
  %694 = vmatprep.subr.mxu0 %v682
  %695 = vmatpush1.msra.mxu0 %v680
  %696 = vmatprep.subr.mxu0 0.0
  %697 = vmatpush1.msra.mxu0 0.0
  %698 = vmatprep.subr.mxu0 0.0
  %699 = vmatpush1.msra.mxu0 0.0
  %700 = vmatprep.subr.mxu0 0.0
  %701 = vmatpush1.msra.mxu0 0.0
  %702 = vmatprep.subr.mxu0 0.0
  %703 = vmatpush1.msra.mxu0 0.0
  %704 = vmatprep.subr.mxu0 0.0
  %705 = vmatpush1.msra.mxu0 0.0
  %706 = vmatprep.subr.mxu0 0.0
  %707 = vmatpush1.msra.mxu0 0.0
  %708 = vmatprep.subr.mxu0 0.0
  %709 = vmatpush1.msra.mxu0 0.0
  %710 = vmatprep.subr.mxu0 0.0
  %711 = vmatpush1.msra.mxu0 0.0
  %712 = vmatprep.subr.mxu0 0.0
  %713 = vmatpush1.msra.mxu0 0.0
  %714 = vmatprep.subr.mxu0 0.0
  %715 = vmatpush1.msra.mxu0 0.0
  %716 = vmatprep.subr.mxu0 0.0
  %717 = vmatpush1.msra.mxu0 0.0
  %718 = vmatprep.subr.mxu0 0.0
  %719 = vmatpush1.msra.mxu0 0.0
  %720 = vmatprep.subr.mxu0 0.0
  %721 = vmatpush1.msra.mxu0 0.0
  %722 = vmatprep.subr.mxu0 0.0
  %723 = vmatpush1.msra.mxu0 0.0
  %724 = vmatprep.subr.mxu0 0.0
  %725 = vmatpush1.msra.mxu0 0.0
  %726 = vmatprep.subr.mxu0 0.0
  %727 = vmatpush1.msra.mxu0 0.0
  %728 = vmatprep.subr.mxu0 0.0
  %729 = vmatpush1.msra.mxu0 0.0
  %730 = vmatprep.subr.mxu0 0.0
  %731 = vmatpush1.msra.mxu0 0.0
  %732 = vmatprep.subr.mxu0 0.0
  %733 = vmatpush1.msra.mxu0 0.0
  %734 = vmatprep.subr.mxu0 0.0
  %735 = vmatpush1.msra.mxu0 0.0
  %736 = vmatprep.subr.mxu0 0.0
  %737 = vmatpush1.msra.mxu0 0.0
  %738 = vmatprep.subr.mxu0 0.0
  %739 = vmatpush1.msra.mxu0 0.0
  %740 = vmatprep.subr.mxu0 0.0
  %741 = vmatpush1.msra.mxu0 0.0
  %742 = vmatprep.subr.mxu0 0.0
  %743 = vmatpush1.msra.mxu0 0.0
  %744 = vmatprep.subr.mxu0 0.0
  %745 = vmatpush1.msra.mxu0 0.0
  %746 = vmatprep.subr.mxu0 0.0
  %747 = vmatpush1.msra.mxu0 0.0
  %748 = vmatprep.subr.mxu0 0.0
  %749 = vmatpush1.msra.mxu0 0.0
  %750 = vmatprep.subr.mxu0 0.0
  %751 = vmatpush1.msra.mxu0 0.0
  %752 = vmatprep.subr.mxu0 0.0
  %753 = vmatpush1.msra.mxu0 0.0
  %754 = vmatprep.subr.mxu0 0.0
  %755 = vmatpush1.msra.mxu0 0.0
  %756 = vmatprep.subr.mxu0 0.0
  %757 = vmatpush1.msra.mxu0 0.0
  %758 = vmatprep.mubr.f32.mxu0 0.0
  %759 = vmatmul.mubr.f32.gmra.mrb[0].mxu0 %v678
  %v760 = vpop.f32.mrb[0].mxu0
  %v761 = vadd.f32 0.0, %v760
  %v762 = vpop.f32.mrb[0].mxu0
  %v763 = vadd.f32 0.0, %v762
  %764 = vdwg.mxu0
  %765 = vmatprep.subr.mxu0 %v686
  %766 = vmatpush1.msra.mxu0 %v684
  %767 = vmatprep.subr.mxu0 0.0
  %768 = vmatpush1.msra.mxu0 0.0
  %769 = vmatprep.subr.mxu0 0.0
  %770 = vmatpush1.msra.mxu0 0.0
  %771 = vmatprep.subr.mxu0 0.0
  %772 = vmatpush1.msra.mxu0 0.0
  %773 = vmatprep.subr.mxu0 0.0
  %774 = vmatpush1.msra.mxu0 0.0
  %775 = vmatprep.subr.mxu0 0.0
  %776 = vmatpush1.msra.mxu0 0.0
  %777 = vmatprep.subr.mxu0 0.0
  %778 = vmatpush1.msra.mxu0 0.0
  %779 = vmatprep.subr.mxu0 0.0
  %780 = vmatpush1.msra.mxu0 0.0
  %781 = vmatprep.subr.mxu0 0.0
  %782 = vmatpush1.msra.mxu0 0.0
  %783 = vmatprep.subr.mxu0 0.0
  %784 = vmatpush1.msra.mxu0 0.0
  %785 = vmatprep.subr.mxu0 0.0
  %786 = vmatpush1.msra.mxu0 0.0
  %787 = vmatprep.subr.mxu0 0.0
  %788 = vmatpush1.msra.mxu0 0.0
  %789 = vmatprep.subr.mxu0 0.0
  %790 = vmatpush1.msra.mxu0 0.0
  %791 = vmatprep.subr.mxu0 0.0
  %792 = vmatpush1.msra.mxu0 0.0
  %793 = vmatprep.subr.mxu0 0.0
  %794 = vmatpush1.msra.mxu0 0.0
  %795 = vmatprep.subr.mxu0 0.0
  %796 = vmatpush1.msra.mxu0 0.0
  %797 = vmatprep.subr.mxu0 0.0
  %798 = vmatpush1.msra.mxu0 0.0
  %799 = vmatprep.subr.mxu0 0.0
  %800 = vmatpush1.msra.mxu0 0.0
  %801 = vmatprep.subr.mxu0 0.0
  %802 = vmatpush1.msra.mxu0 0.0
  %803 = vmatprep.subr.mxu0 0.0
  %804 = vmatpush1.msra.mxu0 0.0
  %805 = vmatprep.subr.mxu0 0.0
  %806 = vmatpush1.msra.mxu0 0.0
  %807 = vmatprep.subr.mxu0 0.0
  %808 = vmatpush1.msra.mxu0 0.0
  %809 = vmatprep.subr.mxu0 0.0
  %810 = vmatpush1.msra.mxu0 0.0
  %811 = vmatprep.subr.mxu0 0.0
  %812 = vmatpush1.msra.mxu0 0.0
  %813 = vmatprep.subr.mxu0 0.0
  %814 = vmatpush1.msra.mxu0 0.0
  %815 = vmatprep.subr.mxu0 0.0
  %816 = vmatpush1.msra.mxu0 0.0
  %817 = vmatprep.subr.mxu0 0.0
  %818 = vmatpush1.msra.mxu0 0.0
  %819 = vmatprep.subr.mxu0 0.0
  %820 = vmatpush1.msra.mxu0 0.0
  %821 = vmatprep.subr.mxu0 0.0
  %822 = vmatpush1.msra.mxu0 0.0
  %823 = vmatprep.subr.mxu0 0.0
  %824 = vmatpush1.msra.mxu0 0.0
  %825 = vmatprep.subr.mxu0 0.0
  %826 = vmatpush1.msra.mxu0 0.0
  %827 = vmatprep.subr.mxu0 0.0
  %828 = vmatpush1.msra.mxu0 0.0
  %829 = vmatprep.mubr.f32.mxu0 0.0
  %830 = vmatmul.mubr.f32.gmra.mrb[0].mxu0 %v678
  %v831 = vpop.f32.mrb[0].mxu0
  %v832 = vadd.f32 0.0, %v831
  %v833 = vpop.f32.mrb[0].mxu0
  %v834 = vadd.f32 0.0, %v833
  %835 = vdwg.mxu0
  %836 = vmatprep.subr.mxu0 %v690
  %837 = vmatpush1.msra.mxu0 %v688
  %838 = vmatprep.subr.mxu0 0.0
  %839 = vmatpush1.msra.mxu0 0.0
  %840 = vmatprep.subr.mxu0 0.0
  %841 = vmatpush1.msra.mxu0 0.0
  %842 = vmatprep.subr.mxu0 0.0
  %843 = vmatpush1.msra.mxu0 0.0
  %844 = vmatprep.subr.mxu0 0.0
  %845 = vmatpush1.msra.mxu0 0.0
  %846 = vmatprep.subr.mxu0 0.0
  %847 = vmatpush1.msra.mxu0 0.0
  %848 = vmatprep.subr.mxu0 0.0
  %849 = vmatpush1.msra.mxu0 0.0
  %850 = vmatprep.subr.mxu0 0.0
  %851 = vmatpush1.msra.mxu0 0.0
  %852 = vmatprep.subr.mxu0 0.0
  %853 = vmatpush1.msra.mxu0 0.0
  %854 = vmatprep.subr.mxu0 0.0
  %855 = vmatpush1.msra.mxu0 0.0
  %856 = vmatprep.subr.mxu0 0.0
  %857 = vmatpush1.msra.mxu0 0.0
  %858 = vmatprep.subr.mxu0 0.0
  %859 = vmatpush1.msra.mxu0 0.0
  %860 = vmatprep.subr.mxu0 0.0
  %861 = vmatpush1.msra.mxu0 0.0
  %862 = vmatprep.subr.mxu0 0.0
  %863 = vmatpush1.msra.mxu0 0.0
  %864 = vmatprep.subr.mxu0 0.0
  %865 = vmatpush1.msra.mxu0 0.0
  %866 = vmatprep.subr.mxu0 0.0
  %867 = vmatpush1.msra.mxu0 0.0
  %868 = vmatprep.subr.mxu0 0.0
  %869 = vmatpush1.msra.mxu0 0.0
  %870 = vmatprep.subr.mxu0 0.0
  %871 = vmatpush1.msra.mxu0 0.0
  %872 = vmatprep.subr.mxu0 0.0
  %873 = vmatpush1.msra.mxu0 0.0
  %874 = vmatprep.subr.mxu0 0.0
  %875 = vmatpush1.msra.mxu0 0.0
  %876 = vmatprep.subr.mxu0 0.0
  %877 = vmatpush1.msra.mxu0 0.0
  %878 = vmatprep.subr.mxu0 0.0
  %879 = vmatpush1.msra.mxu0 0.0
  %880 = vmatprep.subr.mxu0 0.0
  %881 = vmatpush1.msra.mxu0 0.0
  %882 = vmatprep.subr.mxu0 0.0
  %883 = vmatpush1.msra.mxu0 0.0
  %884 = vmatprep.subr.mxu0 0.0
  %885 = vmatpush1.msra.mxu0 0.0
  %886 = vmatprep.subr.mxu0 0.0
  %887 = vmatpush1.msra.mxu0 0.0
  %888 = vmatprep.subr.mxu0 0.0
  %889 = vmatpush1.msra.mxu0 0.0
  %890 = vmatprep.subr.mxu0 0.0
  %891 = vmatpush1.msra.mxu0 0.0
  %892 = vmatprep.subr.mxu0 0.0
  %893 = vmatpush1.msra.mxu0 0.0
  %894 = vmatprep.subr.mxu0 0.0
  %895 = vmatpush1.msra.mxu0 0.0
  %896 = vmatprep.subr.mxu0 0.0
  %897 = vmatpush1.msra.mxu0 0.0
  %898 = vmatprep.subr.mxu0 0.0
  %899 = vmatpush1.msra.mxu0 0.0
  %900 = vmatprep.mubr.f32.mxu0 0.0
  %901 = vmatmul.mubr.f32.gmra.mrb[0].mxu0 %v678
  %v902 = vpop.f32.mrb[0].mxu0
  %v903 = vadd.f32 0.0, %v902
  %v904 = vpop.f32.mrb[0].mxu0
  %v905 = vadd.f32 0.0, %v904
  %906 = vdwg.mxu0
  %907 = vmatprep.subr.mxu0 0.0
  %908 = vmatpush1.msra.mxu0 %v692
  %909 = vmatprep.subr.mxu0 0.0
  %910 = vmatpush1.msra.mxu0 0.0
  %911 = vmatprep.subr.mxu0 0.0
  %912 = vmatpush1.msra.mxu0 0.0
  %913 = vmatprep.subr.mxu0 0.0
  %914 = vmatpush1.msra.mxu0 0.0
  %915 = vmatprep.subr.mxu0 0.0
  %916 = vmatpush1.msra.mxu0 0.0
  %917 = vmatprep.subr.mxu0 0.0
  %918 = vmatpush1.msra.mxu0 0.0
  %919 = vmatprep.subr.mxu0 0.0
  %920 = vmatpush1.msra.mxu0 0.0
  %921 = vmatprep.subr.mxu0 0.0
  %922 = vmatpush1.msra.mxu0 0.0
  %923 = vmatprep.subr.mxu0 0.0
  %924 = vmatpush1.msra.mxu0 0.0
  %925 = vmatprep.subr.mxu0 0.0
  %926 = vmatpush1.msra.mxu0 0.0
  %927 = vmatprep.subr.mxu0 0.0
  %928 = vmatpush1.msra.mxu0 0.0
  %929 = vmatprep.subr.mxu0 0.0
  %930 = vmatpush1.msra.mxu0 0.0
  %931 = vmatprep.subr.mxu0 0.0
  %932 = vmatpush1.msra.mxu0 0.0
  %933 = vmatprep.subr.mxu0 0.0
  %934 = vmatpush1.msra.mxu0 0.0
  %935 = vmatprep.subr.mxu0 0.0
  %936 = vmatpush1.msra.mxu0 0.0
  %937 = vmatprep.subr.mxu0 0.0
  %938 = vmatpush1.msra.mxu0 0.0
  %939 = vmatprep.subr.mxu0 0.0
  %940 = vmatpush1.msra.mxu0 0.0
  %941 = vmatprep.subr.mxu0 0.0
  %942 = vmatpush1.msra.mxu0 0.0
  %943 = vmatprep.subr.mxu0 0.0
  %944 = vmatpush1.msra.mxu0 0.0
  %945 = vmatprep.subr.mxu0 0.0
  %946 = vmatpush1.msra.mxu0 0.0
  %947 = vmatprep.subr.mxu0 0.0
  %948 = vmatpush1.msra.mxu0 0.0
  %949 = vmatprep.subr.mxu0 0.0
  %950 = vmatpush1.msra.mxu0 0.0
  %951 = vmatprep.subr.mxu0 0.0
  %952 = vmatpush1.msra.mxu0 0.0
  %953 = vmatprep.subr.mxu0 0.0
  %954 = vmatpush1.msra.mxu0 0.0
  %955 = vmatprep.subr.mxu0 0.0
  %956 = vmatpush1.msra.mxu0 0.0
  %957 = vmatprep.subr.mxu0 0.0
  %958 = vmatpush1.msra.mxu0 0.0
  %959 = vmatprep.subr.mxu0 0.0
  %960 = vmatpush1.msra.mxu0 0.0
  %961 = vmatprep.subr.mxu0 0.0
  %962 = vmatpush1.msra.mxu0 0.0
  %963 = vmatprep.subr.mxu0 0.0
  %964 = vmatpush1.msra.mxu0 0.0
  %965 = vmatprep.subr.mxu0 0.0
  %966 = vmatpush1.msra.mxu0 0.0
  %967 = vmatprep.subr.mxu0 0.0
  %968 = vmatpush1.msra.mxu0 0.0
  %969 = vmatprep.subr.mxu0 0.0
  %970 = vmatpush1.msra.mxu0 0.0
  %971 = vmatprep.mubr.f32.mxu0 0.0
  %972 = vmatmul.mubr.f32.gmra.mrb[0].mxu0 %v678
  %v973 = vpop.f32.mrb[0].mxu0
  %v974 = vadd.f32 0.0, %v973
  %v975 = vpop.f32.mrb[0].mxu0
  %976 = vdwg.mxu0
  %v977 = vadd.f32 %v438, %v761
  %v978 = vadd.f32 %v440, %v763
  %v979 = vadd.f32 %v509, %v832
  %v980 = vadd.f32 %v511, %v834
  %v981 = vadd.f32 %v580, %v903
  %v982 = vadd.f32 %v582, %v905
  %v983 = vadd.f32 %v651, %v974
  %s984 = scalar_lea.vmem %s1, 24
  %v985 = vld [vmem:[%s984] sm:$0xff]
  %986 = vrot.lane.b32.xlu0 %v17, 88
  %v987 = vpop.permute.xlu0 %986
  %988 = vrot.lane.b32.xlu0 %v28, 88
  %v989 = vpop.permute.xlu0 %988
  %990 = vrot.lane.b32.xlu0 %v18, 88
  %v991 = vpop.permute.xlu0 %990
  %992 = vrot.lane.b32.xlu0 %v29, 88
  %v993 = vpop.permute.xlu0 %992
  %994 = vrot.lane.b32.xlu0 %v19, 88
  %v995 = vpop.permute.xlu0 %994
  %996 = vrot.lane.b32.xlu0 %v30, 88
  %v997 = vpop.permute.xlu0 %996
  %998 = vrot.lane.b32.xlu0 %v20, 88
  %v999 = vpop.permute.xlu0 %998
  %vm1000 = vcmask 719872
  %v1001 = vsel %vm1000, %v987, %v989
  %v1002 = vsel %vm1000, %v989, %v991
  %v1003 = vsel %vm1000, %v991, %v993
  %v1004 = vsel %vm1000, %v993, %v995
  %v1005 = vsel %vm1000, %v995, %v997
  %v1006 = vsel %vm1000, %v997, %v999
  %v1008 = vsel %vm52, %v985, 0
  %v1010 = vsel %vm56, %v1001, 0
  %v1012 = vsel %vm56, %v1002, 0
  %v1014 = vsel %vm56, %v1003, 0
  %v1016 = vsel %vm56, %v1004, 0
  %v1018 = vsel %vm56, %v1005, 0
  %v1020 = vsel %vm56, %v1006, 0
  %v1022 = vsel %vm56, %v999, 0
  %1024 = vmatprep.subr.mxu0 %v1012
  %1025 = vmatpush1.msra.mxu0 %v1010
  %1026 = vmatprep.subr.mxu0 0.0
  %1027 = vmatpush1.msra.mxu0 0.0
  %1028 = vmatprep.subr.mxu0 0.0
  %1029 = vmatpush1.msra.mxu0 0.0
  %1030 = vmatprep.subr.mxu0 0.0
  %1031 = vmatpush1.msra.mxu0 0.0
  %1032 = vmatprep.subr.mxu0 0.0
  %1033 = vmatpush1.msra.mxu0 0.0
  %1034 = vmatprep.subr.mxu0 0.0
  %1035 = vmatpush1.msra.mxu0 0.0
  %1036 = vmatprep.subr.mxu0 0.0
  %1037 = vmatpush1.msra.mxu0 0.0
  %1038 = vmatprep.subr.mxu0 0.0
  %1039 = vmatpush1.msra.mxu0 0.0
  %1040 = vmatprep.subr.mxu0 0.0
  %1041 = vmatpush1.msra.mxu0 0.0
  %1042 = vmatprep.subr.mxu0 0.0
  %1043 = vmatpush1.msra.mxu0 0.0
  %1044 = vmatprep.subr.mxu0 0.0
  %1045 = vmatpush1.msra.mxu0 0.0
  %1046 = vmatprep.subr.mxu0 0.0
  %1047 = vmatpush1.msra.mxu0 0.0
  %1048 = vmatprep.subr.mxu0 0.0
  %1049 = vmatpush1.msra.mxu0 0.0
  %1050 = vmatprep.subr.mxu0 0.0
  %1051 = vmatpush1.msra.mxu0 0.0
  %1052 = vmatprep.subr.mxu0 0.0
  %1053 = vmatpush1.msra.mxu0 0.0
  %1054 = vmatprep.subr.mxu0 0.0
  %1055 = vmatpush1.msra.mxu0 0.0
  %1056 = vmatprep.subr.mxu0 0.0
  %1057 = vmatpush1.msra.mxu0 0.0
  %1058 = vmatprep.subr.mxu0 0.0
  %1059 = vmatpush1.msra.mxu0 0.0
  %1060 = vmatprep.subr.mxu0 0.0
  %1061 = vmatpush1.msra.mxu0 0.0
  %1062 = vmatprep.subr.mxu0 0.0
  %1063 = vmatpush1.msra.mxu0 0.0
  %1064 = vmatprep.subr.mxu0 0.0
  %1065 = vmatpush1.msra.mxu0 0.0
  %1066 = vmatprep.subr.mxu0 0.0
  %1067 = vmatpush1.msra.mxu0 0.0
  %1068 = vmatprep.subr.mxu0 0.0
  %1069 = vmatpush1.msra.mxu0 0.0
  %1070 = vmatprep.subr.mxu0 0.0
  %1071 = vmatpush1.msra.mxu0 0.0
  %1072 = vmatprep.subr.mxu0 0.0
  %1073 = vmatpush1.msra.mxu0 0.0
  %1074 = vmatprep.subr.mxu0 0.0
  %1075 = vmatpush1.msra.mxu0 0.0
  %1076 = vmatprep.subr.mxu0 0.0
  %1077 = vmatpush1.msra.mxu0 0.0
  %1078 = vmatprep.subr.mxu0 0.0
  %1079 = vmatpush1.msra.mxu0 0.0
  %1080 = vmatprep.subr.mxu0 0.0
  %1081 = vmatpush1.msra.mxu0 0.0
  %1082 = vmatprep.subr.mxu0 0.0
  %1083 = vmatpush1.msra.mxu0 0.0
  %1084 = vmatprep.subr.mxu0 0.0
  %1085 = vmatpush1.msra.mxu0 0.0
  %1086 = vmatprep.subr.mxu0 0.0
  %1087 = vmatpush1.msra.mxu0 0.0
  %1088 = vmatprep.mubr.f32.mxu0 0.0
  %1089 = vmatmul.mubr.f32.gmra.mrb[0].mxu0 %v1008
  %v1090 = vpop.f32.mrb[0].mxu0
  %v1091 = vadd.f32 0.0, %v1090
  %v1092 = vpop.f32.mrb[0].mxu0
  %v1093 = vadd.f32 0.0, %v1092
  %1094 = vdwg.mxu0
  %1095 = vmatprep.subr.mxu0 %v1016
  %1096 = vmatpush1.msra.mxu0 %v1014
  %1097 = vmatprep.subr.mxu0 0.0
  %1098 = vmatpush1.msra.mxu0 0.0
  %1099 = vmatprep.subr.mxu0 0.0
  %1100 = vmatpush1.msra.mxu0 0.0
  %1101 = vmatprep.subr.mxu0 0.0
  %1102 = vmatpush1.msra.mxu0 0.0
  %1103 = vmatprep.subr.mxu0 0.0
  %1104 = vmatpush1.msra.mxu0 0.0
  %1105 = vmatprep.subr.mxu0 0.0
  %1106 = vmatpush1.msra.mxu0 0.0
  %1107 = vmatprep.subr.mxu0 0.0
  %1108 = vmatpush1.msra.mxu0 0.0
  %1109 = vmatprep.subr.mxu0 0.0
  %1110 = vmatpush1.msra.mxu0 0.0
  %1111 = vmatprep.subr.mxu0 0.0
  %1112 = vmatpush1.msra.mxu0 0.0
  %1113 = vmatprep.subr.mxu0 0.0
  %1114 = vmatpush1.msra.mxu0 0.0
  %1115 = vmatprep.subr.mxu0 0.0
  %1116 = vmatpush1.msra.mxu0 0.0
  %1117 = vmatprep.subr.mxu0 0.0
  %1118 = vmatpush1.msra.mxu0 0.0
  %1119 = vmatprep.subr.mxu0 0.0
  %1120 = vmatpush1.msra.mxu0 0.0
  %1121 = vmatprep.subr.mxu0 0.0
  %1122 = vmatpush1.msra.mxu0 0.0
  %1123 = vmatprep.subr.mxu0 0.0
  %1124 = vmatpush1.msra.mxu0 0.0
  %1125 = vmatprep.subr.mxu0 0.0
  %1126 = vmatpush1.msra.mxu0 0.0
  %1127 = vmatprep.subr.mxu0 0.0
  %1128 = vmatpush1.msra.mxu0 0.0
  %1129 = vmatprep.subr.mxu0 0.0
  %1130 = vmatpush1.msra.mxu0 0.0
  %1131 = vmatprep.subr.mxu0 0.0
  %1132 = vmatpush1.msra.mxu0 0.0
  %1133 = vmatprep.subr.mxu0 0.0
  %1134 = vmatpush1.msra.mxu0 0.0
  %1135 = vmatprep.subr.mxu0 0.0
  %1136 = vmatpush1.msra.mxu0 0.0
  %1137 = vmatprep.subr.mxu0 0.0
  %1138 = vmatpush1.msra.mxu0 0.0
  %1139 = vmatprep.subr.mxu0 0.0
  %1140 = vmatpush1.msra.mxu0 0.0
  %1141 = vmatprep.subr.mxu0 0.0
  %1142 = vmatpush1.msra.mxu0 0.0
  %1143 = vmatprep.subr.mxu0 0.0
  %1144 = vmatpush1.msra.mxu0 0.0
  %1145 = vmatprep.subr.mxu0 0.0
  %1146 = vmatpush1.msra.mxu0 0.0
  %1147 = vmatprep.subr.mxu0 0.0
  %1148 = vmatpush1.msra.mxu0 0.0
  %1149 = vmatprep.subr.mxu0 0.0
  %1150 = vmatpush1.msra.mxu0 0.0
  %1151 = vmatprep.subr.mxu0 0.0
  %1152 = vmatpush1.msra.mxu0 0.0
  %1153 = vmatprep.subr.mxu0 0.0
  %1154 = vmatpush1.msra.mxu0 0.0
  %1155 = vmatprep.subr.mxu0 0.0
  %1156 = vmatpush1.msra.mxu0 0.0
  %1157 = vmatprep.subr.mxu0 0.0
  %1158 = vmatpush1.msra.mxu0 0.0
  %1159 = vmatprep.mubr.f32.mxu0 0.0
  %1160 = vmatmul.mubr.f32.gmra.mrb[0].mxu0 %v1008
  %v1161 = vpop.f32.mrb[0].mxu0
  %v1162 = vadd.f32 0.0, %v1161
  %v1163 = vpop.f32.mrb[0].mxu0
  %v1164 = vadd.f32 0.0, %v1163
  %1165 = vdwg.mxu0
  %1166 = vmatprep.subr.mxu0 %v1020
  %1167 = vmatpush1.msra.mxu0 %v1018
  %1168 = vmatprep.subr.mxu0 0.0
  %1169 = vmatpush1.msra.mxu0 0.0
  %1170 = vmatprep.subr.mxu0 0.0
  %1171 = vmatpush1.msra.mxu0 0.0
  %1172 = vmatprep.subr.mxu0 0.0
  %1173 = vmatpush1.msra.mxu0 0.0
  %1174 = vmatprep.subr.mxu0 0.0
  %1175 = vmatpush1.msra.mxu0 0.0
  %1176 = vmatprep.subr.mxu0 0.0
  %1177 = vmatpush1.msra.mxu0 0.0
  %1178 = vmatprep.subr.mxu0 0.0
  %1179 = vmatpush1.msra.mxu0 0.0
  %1180 = vmatprep.subr.mxu0 0.0
  %1181 = vmatpush1.msra.mxu0 0.0
  %1182 = vmatprep.subr.mxu0 0.0
  %1183 = vmatpush1.msra.mxu0 0.0
  %1184 = vmatprep.subr.mxu0 0.0
  %1185 = vmatpush1.msra.mxu0 0.0
  %1186 = vmatprep.subr.mxu0 0.0
  %1187 = vmatpush1.msra.mxu0 0.0
  %1188 = vmatprep.subr.mxu0 0.0
  %1189 = vmatpush1.msra.mxu0 0.0
  %1190 = vmatprep.subr.mxu0 0.0
  %1191 = vmatpush1.msra.mxu0 0.0
  %1192 = vmatprep.subr.mxu0 0.0
  %1193 = vmatpush1.msra.mxu0 0.0
  %1194 = vmatprep.subr.mxu0 0.0
  %1195 = vmatpush1.msra.mxu0 0.0
  %1196 = vmatprep.subr.mxu0 0.0
  %1197 = vmatpush1.msra.mxu0 0.0
  %1198 = vmatprep.subr.mxu0 0.0
  %1199 = vmatpush1.msra.mxu0 0.0
  %1200 = vmatprep.subr.mxu0 0.0
  %1201 = vmatpush1.msra.mxu0 0.0
  %1202 = vmatprep.subr.mxu0 0.0
  %1203 = vmatpush1.msra.mxu0 0.0
  %1204 = vmatprep.subr.mxu0 0.0
  %1205 = vmatpush1.msra.mxu0 0.0
  %1206 = vmatprep.subr.mxu0 0.0
  %1207 = vmatpush1.msra.mxu0 0.0
  %1208 = vmatprep.subr.mxu0 0.0
  %1209 = vmatpush1.msra.mxu0 0.0
  %1210 = vmatprep.subr.mxu0 0.0
  %1211 = vmatpush1.msra.mxu0 0.0
  %1212 = vmatprep.subr.mxu0 0.0
  %1213 = vmatpush1.msra.mxu0 0.0
  %1214 = vmatprep.subr.mxu0 0.0
  %1215 = vmatpush1.msra.mxu0 0.0
  %1216 = vmatprep.subr.mxu0 0.0
  %1217 = vmatpush1.msra.mxu0 0.0
  %1218 = vmatprep.subr.mxu0 0.0
  %1219 = vmatpush1.msra.mxu0 0.0
  %1220 = vmatprep.subr.mxu0 0.0
  %1221 = vmatpush1.msra.mxu0 0.0
  %1222 = vmatprep.subr.mxu0 0.0
  %1223 = vmatpush1.msra.mxu0 0.0
  %1224 = vmatprep.subr.mxu0 0.0
  %1225 = vmatpush1.msra.mxu0 0.0
  %1226 = vmatprep.subr.mxu0 0.0
  %1227 = vmatpush1.msra.mxu0 0.0
  %1228 = vmatprep.subr.mxu0 0.0
  %1229 = vmatpush1.msra.mxu0 0.0
  %1230 = vmatprep.mubr.f32.mxu0 0.0
  %1231 = vmatmul.mubr.f32.gmra.mrb[0].mxu0 %v1008
  %v1232 = vpop.f32.mrb[0].mxu0
  %v1233 = vadd.f32 0.0, %v1232
  %v1234 = vpop.f32.mrb[0].mxu0
  %v1235 = vadd.f32 0.0, %v1234
  %1236 = vdwg.mxu0
  %1237 = vmatprep.subr.mxu0 0.0
  %1238 = vmatpush1.msra.mxu0 %v1022
  %1239 = vmatprep.subr.mxu0 0.0
  %1240 = vmatpush1.msra.mxu0 0.0
  %1241 = vmatprep.subr.mxu0 0.0
  %1242 = vmatpush1.msra.mxu0 0.0
  %1243 = vmatprep.subr.mxu0 0.0
  %1244 = vmatpush1.msra.mxu0 0.0
  %1245 = vmatprep.subr.mxu0 0.0
  %1246 = vmatpush1.msra.mxu0 0.0
  %1247 = vmatprep.subr.mxu0 0.0
  %1248 = vmatpush1.msra.mxu0 0.0
  %1249 = vmatprep.subr.mxu0 0.0
  %1250 = vmatpush1.msra.mxu0 0.0
  %1251 = vmatprep.subr.mxu0 0.0
  %1252 = vmatpush1.msra.mxu0 0.0
  %1253 = vmatprep.subr.mxu0 0.0
  %1254 = vmatpush1.msra.mxu0 0.0
  %1255 = vmatprep.subr.mxu0 0.0
  %1256 = vmatpush1.msra.mxu0 0.0
  %1257 = vmatprep.subr.mxu0 0.0
  %1258 = vmatpush1.msra.mxu0 0.0
  %1259 = vmatprep.subr.mxu0 0.0
  %1260 = vmatpush1.msra.mxu0 0.0
  %1261 = vmatprep.subr.mxu0 0.0
  %1262 = vmatpush1.msra.mxu0 0.0
  %1263 = vmatprep.subr.mxu0 0.0
  %1264 = vmatpush1.msra.mxu0 0.0
  %1265 = vmatprep.subr.mxu0 0.0
  %1266 = vmatpush1.msra.mxu0 0.0
  %1267 = vmatprep.subr.mxu0 0.0
  %1268 = vmatpush1.msra.mxu0 0.0
  %1269 = vmatprep.subr.mxu0 0.0
  %1270 = vmatpush1.msra.mxu0 0.0
  %1271 = vmatprep.subr.mxu0 0.0
  %1272 = vmatpush1.msra.mxu0 0.0
  %1273 = vmatprep.subr.mxu0 0.0
  %1274 = vmatpush1.msra.mxu0 0.0
  %1275 = vmatprep.subr.mxu0 0.0
  %1276 = vmatpush1.msra.mxu0 0.0
  %1277 = vmatprep.subr.mxu0 0.0
  %1278 = vmatpush1.msra.mxu0 0.0
  %1279 = vmatprep.subr.mxu0 0.0
  %1280 = vmatpush1.msra.mxu0 0.0
  %1281 = vmatprep.subr.mxu0 0.0
  %1282 = vmatpush1.msra.mxu0 0.0
  %1283 = vmatprep.subr.mxu0 0.0
  %1284 = vmatpush1.msra.mxu0 0.0
  %1285 = vmatprep.subr.mxu0 0.0
  %1286 = vmatpush1.msra.mxu0 0.0
  %1287 = vmatprep.subr.mxu0 0.0
  %1288 = vmatpush1.msra.mxu0 0.0
  %1289 = vmatprep.subr.mxu0 0.0
  %1290 = vmatpush1.msra.mxu0 0.0
  %1291 = vmatprep.subr.mxu0 0.0
  %1292 = vmatpush1.msra.mxu0 0.0
  %1293 = vmatprep.subr.mxu0 0.0
  %1294 = vmatpush1.msra.mxu0 0.0
  %1295 = vmatprep.subr.mxu0 0.0
  %1296 = vmatpush1.msra.mxu0 0.0
  %1297 = vmatprep.subr.mxu0 0.0
  %1298 = vmatpush1.msra.mxu0 0.0
  %1299 = vmatprep.subr.mxu0 0.0
  %1300 = vmatpush1.msra.mxu0 0.0
  %1301 = vmatprep.mubr.f32.mxu0 0.0
  %1302 = vmatmul.mubr.f32.gmra.mrb[0].mxu0 %v1008
  %v1303 = vpop.f32.mrb[0].mxu0
  %v1304 = vadd.f32 0.0, %v1303
  %v1305 = vpop.f32.mrb[0].mxu0
  %1306 = vdwg.mxu0
  %v1307 = vadd.f32 %v977, %v1091
  %v1308 = vadd.f32 %v978, %v1093
  %v1309 = vadd.f32 %v979, %v1162
  %v1310 = vadd.f32 %v980, %v1164
  %v1311 = vadd.f32 %v981, %v1233
  %v1312 = vadd.f32 %v982, %v1235
  %v1313 = vadd.f32 %v983, %v1304
  %s1314 = scalar_lea.vmem %s1, 32
  %v1315 = vld [vmem:[%s1314] sm:$0xff]
  %1316 = vrot.lane.b32.xlu0 %v17, 86
  %v1317 = vpop.permute.xlu0 %1316
  %1318 = vrot.lane.b32.xlu0 %v28, 86
  %v1319 = vpop.permute.xlu0 %1318
  %1320 = vrot.lane.b32.xlu0 %v18, 86
  %v1321 = vpop.permute.xlu0 %1320
  %1322 = vrot.lane.b32.xlu0 %v29, 86
  %v1323 = vpop.permute.xlu0 %1322
  %1324 = vrot.lane.b32.xlu0 %v19, 86
  %v1325 = vpop.permute.xlu0 %1324
  %1326 = vrot.lane.b32.xlu0 %v30, 86
  %v1327 = vpop.permute.xlu0 %1326
  %1328 = vrot.lane.b32.xlu0 %v20, 86
  %v1329 = vpop.permute.xlu0 %1328
  %vm1330 = vcmask 703488
  %v1331 = vsel %vm1330, %v1317, %v1319
  %v1332 = vsel %vm1330, %v1319, %v1321
  %v1333 = vsel %vm1330, %v1321, %v1323
  %v1334 = vsel %vm1330, %v1323, %v1325
  %v1335 = vsel %vm1330, %v1325, %v1327
  %v1336 = vsel %vm1330, %v1327, %v1329
  %v1338 = vsel %vm52, %v1315, 0
  %v1340 = vsel %vm56, %v1331, 0
  %v1342 = vsel %vm56, %v1332, 0
  %v1344 = vsel %vm56, %v1333, 0
  %v1346 = vsel %vm56, %v1334, 0
  %v1348 = vsel %vm56, %v1335, 0
  %v1350 = vsel %vm56, %v1336, 0
  %v1352 = vsel %vm56, %v1329, 0
  %1354 = vmatprep.subr.mxu0 %v1342
  %1355 = vmatpush1.msra.mxu0 %v1340
  %1356 = vmatprep.subr.mxu0 0.0
  %1357 = vmatpush1.msra.mxu0 0.0
  %1358 = vmatprep.subr.mxu0 0.0
  %1359 = vmatpush1.msra.mxu0 0.0
  %1360 = vmatprep.subr.mxu0 0.0
  %1361 = vmatpush1.msra.mxu0 0.0
  %1362 = vmatprep.subr.mxu0 0.0
  %1363 = vmatpush1.msra.mxu0 0.0
  %1364 = vmatprep.subr.mxu0 0.0
  %1365 = vmatpush1.msra.mxu0 0.0
  %1366 = vmatprep.subr.mxu0 0.0
  %1367 = vmatpush1.msra.mxu0 0.0
  %1368 = vmatprep.subr.mxu0 0.0
  %1369 = vmatpush1.msra.mxu0 0.0
  %1370 = vmatprep.subr.mxu0 0.0
  %1371 = vmatpush1.msra.mxu0 0.0
  %1372 = vmatprep.subr.mxu0 0.0
  %1373 = vmatpush1.msra.mxu0 0.0
  %1374 = vmatprep.subr.mxu0 0.0
  %1375 = vmatpush1.msra.mxu0 0.0
  %1376 = vmatprep.subr.mxu0 0.0
  %1377 = vmatpush1.msra.mxu0 0.0
  %1378 = vmatprep.subr.mxu0 0.0
  %1379 = vmatpush1.msra.mxu0 0.0
  %1380 = vmatprep.subr.mxu0 0.0
  %1381 = vmatpush1.msra.mxu0 0.0
  %1382 = vmatprep.subr.mxu0 0.0
  %1383 = vmatpush1.msra.mxu0 0.0
  %1384 = vmatprep.subr.mxu0 0.0
  %1385 = vmatpush1.msra.mxu0 0.0
  %1386 = vmatprep.subr.mxu0 0.0
  %1387 = vmatpush1.msra.mxu0 0.0
  %1388 = vmatprep.subr.mxu0 0.0
  %1389 = vmatpush1.msra.mxu0 0.0
  %1390 = vmatprep.subr.mxu0 0.0
  %1391 = vmatpush1.msra.mxu0 0.0
  %1392 = vmatprep.subr.mxu0 0.0
  %1393 = vmatpush1.msra.mxu0 0.0
  %1394 = vmatprep.subr.mxu0 0.0
  %1395 = vmatpush1.msra.mxu0 0.0
  %1396 = vmatprep.subr.mxu0 0.0
  %1397 = vmatpush1.msra.mxu0 0.0
  %1398 = vmatprep.subr.mxu0 0.0
  %1399 = vmatpush1.msra.mxu0 0.0
  %1400 = vmatprep.subr.mxu0 0.0
  %1401 = vmatpush1.msra.mxu0 0.0
  %1402 = vmatprep.subr.mxu0 0.0
  %1403 = vmatpush1.msra.mxu0 0.0
  %1404 = vmatprep.subr.mxu0 0.0
  %1405 = vmatpush1.msra.mxu0 0.0
  %1406 = vmatprep.subr.mxu0 0.0
  %1407 = vmatpush1.msra.mxu0 0.0
  %1408 = vmatprep.subr.mxu0 0.0
  %1409 = vmatpush1.msra.mxu0 0.0
  %1410 = vmatprep.subr.mxu0 0.0
  %1411 = vmatpush1.msra.mxu0 0.0
  %1412 = vmatprep.subr.mxu0 0.0
  %1413 = vmatpush1.msra.mxu0 0.0
  %1414 = vmatprep.subr.mxu0 0.0
  %1415 = vmatpush1.msra.mxu0 0.0
  %1416 = vmatprep.subr.mxu0 0.0
  %1417 = vmatpush1.msra.mxu0 0.0
  %1418 = vmatprep.mubr.f32.mxu0 0.0
  %1419 = vmatmul.mubr.f32.gmra.mrb[0].mxu0 %v1338
  %v1420 = vpop.f32.mrb[0].mxu0
  %v1421 = vadd.f32 0.0, %v1420
  %v1422 = vpop.f32.mrb[0].mxu0
  %v1423 = vadd.f32 0.0, %v1422
  %1424 = vdwg.mxu0
  %1425 = vmatprep.subr.mxu0 %v1346
  %1426 = vmatpush1.msra.mxu0 %v1344
  %1427 = vmatprep.subr.mxu0 0.0
  %1428 = vmatpush1.msra.mxu0 0.0
  %1429 = vmatprep.subr.mxu0 0.0
  %1430 = vmatpush1.msra.mxu0 0.0
  %1431 = vmatprep.subr.mxu0 0.0
  %1432 = vmatpush1.msra.mxu0 0.0
  %1433 = vmatprep.subr.mxu0 0.0
  %1434 = vmatpush1.msra.mxu0 0.0
  %1435 = vmatprep.subr.mxu0 0.0
  %1436 = vmatpush1.msra.mxu0 0.0
  %1437 = vmatprep.subr.mxu0 0.0
  %1438 = vmatpush1.msra.mxu0 0.0
  %1439 = vmatprep.subr.mxu0 0.0
  %1440 = vmatpush1.msra.mxu0 0.0
  %1441 = vmatprep.subr.mxu0 0.0
  %1442 = vmatpush1.msra.mxu0 0.0
  %1443 = vmatprep.subr.mxu0 0.0
  %1444 = vmatpush1.msra.mxu0 0.0
  %1445 = vmatprep.subr.mxu0 0.0
  %1446 = vmatpush1.msra.mxu0 0.0
  %1447 = vmatprep.subr.mxu0 0.0
  %1448 = vmatpush1.msra.mxu0 0.0
  %1449 = vmatprep.subr.mxu0 0.0
  %1450 = vmatpush1.msra.mxu0 0.0
  %1451 = vmatprep.subr.mxu0 0.0
  %1452 = vmatpush1.msra.mxu0 0.0
  %1453 = vmatprep.subr.mxu0 0.0
  %1454 = vmatpush1.msra.mxu0 0.0
  %1455 = vmatprep.subr.mxu0 0.0
  %1456 = vmatpush1.msra.mxu0 0.0
  %1457 = vmatprep.subr.mxu0 0.0
  %1458 = vmatpush1.msra.mxu0 0.0
  %1459 = vmatprep.subr.mxu0 0.0
  %1460 = vmatpush1.msra.mxu0 0.0
  %1461 = vmatprep.subr.mxu0 0.0
  %1462 = vmatpush1.msra.mxu0 0.0
  %1463 = vmatprep.subr.mxu0 0.0
  %1464 = vmatpush1.msra.mxu0 0.0
  %1465 = vmatprep.subr.mxu0 0.0
  %1466 = vmatpush1.msra.mxu0 0.0
  %1467 = vmatprep.subr.mxu0 0.0
  %1468 = vmatpush1.msra.mxu0 0.0
  %1469 = vmatprep.subr.mxu0 0.0
  %1470 = vmatpush1.msra.mxu0 0.0
  %1471 = vmatprep.subr.mxu0 0.0
  %1472 = vmatpush1.msra.mxu0 0.0
  %1473 = vmatprep.subr.mxu0 0.0
  %1474 = vmatpush1.msra.mxu0 0.0
  %1475 = vmatprep.subr.mxu0 0.0
  %1476 = vmatpush1.msra.mxu0 0.0
  %1477 = vmatprep.subr.mxu0 0.0
  %1478 = vmatpush1.msra.mxu0 0.0
  %1479 = vmatprep.subr.mxu0 0.0
  %1480 = vmatpush1.msra.mxu0 0.0
  %1481 = vmatprep.subr.mxu0 0.0
  %1482 = vmatpush1.msra.mxu0 0.0
  %1483 = vmatprep.subr.mxu0 0.0
  %1484 = vmatpush1.msra.mxu0 0.0
  %1485 = vmatprep.subr.mxu0 0.0
  %1486 = vmatpush1.msra.mxu0 0.0
  %1487 = vmatprep.subr.mxu0 0.0
  %1488 = vmatpush1.msra.mxu0 0.0
  %1489 = vmatprep.mubr.f32.mxu0 0.0
  %1490 = vmatmul.mubr.f32.gmra.mrb[0].mxu0 %v1338
  %v1491 = vpop.f32.mrb[0].mxu0
  %v1492 = vadd.f32 0.0, %v1491
  %v1493 = vpop.f32.mrb[0].mxu0
  %v1494 = vadd.f32 0.0, %v1493
  %1495 = vdwg.mxu0
  %1496 = vmatprep.subr.mxu0 %v1350
  %1497 = vmatpush1.msra.mxu0 %v1348
  %1498 = vmatprep.subr.mxu0 0.0
  %1499 = vmatpush1.msra.mxu0 0.0
  %1500 = vmatprep.subr.mxu0 0.0
  %1501 = vmatpush1.msra.mxu0 0.0
  %1502 = vmatprep.subr.mxu0 0.0
  %1503 = vmatpush1.msra.mxu0 0.0
  %1504 = vmatprep.subr.mxu0 0.0
  %1505 = vmatpush1.msra.mxu0 0.0
  %1506 = vmatprep.subr.mxu0 0.0
  %1507 = vmatpush1.msra.mxu0 0.0
  %1508 = vmatprep.subr.mxu0 0.0
  %1509 = vmatpush1.msra.mxu0 0.0
  %1510 = vmatprep.subr.mxu0 0.0
  %1511 = vmatpush1.msra.mxu0 0.0
  %1512 = vmatprep.subr.mxu0 0.0
  %1513 = vmatpush1.msra.mxu0 0.0
  %1514 = vmatprep.subr.mxu0 0.0
  %1515 = vmatpush1.msra.mxu0 0.0
  %1516 = vmatprep.subr.mxu0 0.0
  %1517 = vmatpush1.msra.mxu0 0.0
  %1518 = vmatprep.subr.mxu0 0.0
  %1519 = vmatpush1.msra.mxu0 0.0
  %1520 = vmatprep.subr.mxu0 0.0
  %1521 = vmatpush1.msra.mxu0 0.0
  %1522 = vmatprep.subr.mxu0 0.0
  %1523 = vmatpush1.msra.mxu0 0.0
  %1524 = vmatprep.subr.mxu0 0.0
  %1525 = vmatpush1.msra.mxu0 0.0
  %1526 = vmatprep.subr.mxu0 0.0
  %1527 = vmatpush1.msra.mxu0 0.0
  %1528 = vmatprep.subr.mxu0 0.0
  %1529 = vmatpush1.msra.mxu0 0.0
  %1530 = vmatprep.subr.mxu0 0.0
  %1531 = vmatpush1.msra.mxu0 0.0
  %1532 = vmatprep.subr.mxu0 0.0
  %1533 = vmatpush1.msra.mxu0 0.0
  %1534 = vmatprep.subr.mxu0 0.0
  %1535 = vmatpush1.msra.mxu0 0.0
  %1536 = vmatprep.subr.mxu0 0.0
  %1537 = vmatpush1.msra.mxu0 0.0
  %1538 = vmatprep.subr.mxu0 0.0
  %1539 = vmatpush1.msra.mxu0 0.0
  %1540 = vmatprep.subr.mxu0 0.0
  %1541 = vmatpush1.msra.mxu0 0.0
  %1542 = vmatprep.subr.mxu0 0.0
  %1543 = vmatpush1.msra.mxu0 0.0
  %1544 = vmatprep.subr.mxu0 0.0
  %1545 = vmatpush1.msra.mxu0 0.0
  %1546 = vmatprep.subr.mxu0 0.0
  %1547 = vmatpush1.msra.mxu0 0.0
  %1548 = vmatprep.subr.mxu0 0.0
  %1549 = vmatpush1.msra.mxu0 0.0
  %1550 = vmatprep.subr.mxu0 0.0
  %1551 = vmatpush1.msra.mxu0 0.0
  %1552 = vmatprep.subr.mxu0 0.0
  %1553 = vmatpush1.msra.mxu0 0.0
  %1554 = vmatprep.subr.mxu0 0.0
  %1555 = vmatpush1.msra.mxu0 0.0
  %1556 = vmatprep.subr.mxu0 0.0
  %1557 = vmatpush1.msra.mxu0 0.0
  %1558 = vmatprep.subr.mxu0 0.0
  %1559 = vmatpush1.msra.mxu0 0.0
  %1560 = vmatprep.mubr.f32.mxu0 0.0
  %1561 = vmatmul.mubr.f32.gmra.mrb[0].mxu0 %v1338
  %v1562 = vpop.f32.mrb[0].mxu0
  %v1563 = vadd.f32 0.0, %v1562
  %v1564 = vpop.f32.mrb[0].mxu0
  %v1565 = vadd.f32 0.0, %v1564
  %1566 = vdwg.mxu0
  %1567 = vmatprep.subr.mxu0 0.0
  %1568 = vmatpush1.msra.mxu0 %v1352
  %1569 = vmatprep.subr.mxu0 0.0
  %1570 = vmatpush1.msra.mxu0 0.0
  %1571 = vmatprep.subr.mxu0 0.0
  %1572 = vmatpush1.msra.mxu0 0.0
  %1573 = vmatprep.subr.mxu0 0.0
  %1574 = vmatpush1.msra.mxu0 0.0
  %1575 = vmatprep.subr.mxu0 0.0
  %1576 = vmatpush1.msra.mxu0 0.0
  %1577 = vmatprep.subr.mxu0 0.0
  %1578 = vmatpush1.msra.mxu0 0.0
  %1579 = vmatprep.subr.mxu0 0.0
  %1580 = vmatpush1.msra.mxu0 0.0
  %1581 = vmatprep.subr.mxu0 0.0
  %1582 = vmatpush1.msra.mxu0 0.0
  %1583 = vmatprep.subr.mxu0 0.0
  %1584 = vmatpush1.msra.mxu0 0.0
  %1585 = vmatprep.subr.mxu0 0.0
  %1586 = vmatpush1.msra.mxu0 0.0
  %1587 = vmatprep.subr.mxu0 0.0
  %1588 = vmatpush1.msra.mxu0 0.0
  %1589 = vmatprep.subr.mxu0 0.0
  %1590 = vmatpush1.msra.mxu0 0.0
  %1591 = vmatprep.subr.mxu0 0.0
  %1592 = vmatpush1.msra.mxu0 0.0
  %1593 = vmatprep.subr.mxu0 0.0
  %1594 = vmatpush1.msra.mxu0 0.0
  %1595 = vmatprep.subr.mxu0 0.0
  %1596 = vmatpush1.msra.mxu0 0.0
  %1597 = vmatprep.subr.mxu0 0.0
  %1598 = vmatpush1.msra.mxu0 0.0
  %1599 = vmatprep.subr.mxu0 0.0
  %1600 = vmatpush1.msra.mxu0 0.0
  %1601 = vmatprep.subr.mxu0 0.0
  %1602 = vmatpush1.msra.mxu0 0.0
  %1603 = vmatprep.subr.mxu0 0.0
  %1604 = vmatpush1.msra.mxu0 0.0
  %1605 = vmatprep.subr.mxu0 0.0
  %1606 = vmatpush1.msra.mxu0 0.0
  %1607 = vmatprep.subr.mxu0 0.0
  %1608 = vmatpush1.msra.mxu0 0.0
  %1609 = vmatprep.subr.mxu0 0.0
  %1610 = vmatpush1.msra.mxu0 0.0
  %1611 = vmatprep.subr.mxu0 0.0
  %1612 = vmatpush1.msra.mxu0 0.0
  %1613 = vmatprep.subr.mxu0 0.0
  %1614 = vmatpush1.msra.mxu0 0.0
  %1615 = vmatprep.subr.mxu0 0.0
  %1616 = vmatpush1.msra.mxu0 0.0
  %1617 = vmatprep.subr.mxu0 0.0
  %1618 = vmatpush1.msra.mxu0 0.0
  %1619 = vmatprep.subr.mxu0 0.0
  %1620 = vmatpush1.msra.mxu0 0.0
  %1621 = vmatprep.subr.mxu0 0.0
  %1622 = vmatpush1.msra.mxu0 0.0
  %1623 = vmatprep.subr.mxu0 0.0
  %1624 = vmatpush1.msra.mxu0 0.0
  %1625 = vmatprep.subr.mxu0 0.0
  %1626 = vmatpush1.msra.mxu0 0.0
  %1627 = vmatprep.subr.mxu0 0.0
  %1628 = vmatpush1.msra.mxu0 0.0
  %1629 = vmatprep.subr.mxu0 0.0
  %1630 = vmatpush1.msra.mxu0 0.0
  %1631 = vmatprep.mubr.f32.mxu0 0.0
  %1632 = vmatmul.mubr.f32.gmra.mrb[0].mxu0 %v1338
  %v1633 = vpop.f32.mrb[0].mxu0
  %v1634 = vadd.f32 0.0, %v1633
  %v1635 = vpop.f32.mrb[0].mxu0
  %1636 = vdwg.mxu0
  %v1637 = vadd.f32 %v1307, %v1421
  %v1638 = vadd.f32 %v1308, %v1423
  %v1639 = vadd.f32 %v1309, %v1492
  %v1640 = vadd.f32 %v1310, %v1494
  %v1641 = vadd.f32 %v1311, %v1563
  %v1642 = vadd.f32 %v1312, %v1565
  %v1643 = vadd.f32 %v1313, %v1634
  %s1644 = scalar_lea.vmem %s1, 40
  %v1645 = vld [vmem:[%s1644] sm:$0xff]
  %1646 = vrot.lane.b32.xlu0 %v17, 84
  %v1647 = vpop.permute.xlu0 %1646
  %1648 = vrot.lane.b32.xlu0 %v28, 84
  %v1649 = vpop.permute.xlu0 %1648
  %1650 = vrot.lane.b32.xlu0 %v18, 84
  %v1651 = vpop.permute.xlu0 %1650
  %1652 = vrot.lane.b32.xlu0 %v29, 84
  %v1653 = vpop.permute.xlu0 %1652
  %1654 = vrot.lane.b32.xlu0 %v19, 84
  %v1655 = vpop.permute.xlu0 %1654
  %1656 = vrot.lane.b32.xlu0 %v30, 84
  %v1657 = vpop.permute.xlu0 %1656
  %1658 = vrot.lane.b32.xlu0 %v20, 84
  %v1659 = vpop.permute.xlu0 %1658
  %vm1660 = vcmask 687104
  %v1661 = vsel %vm1660, %v1647, %v1649
  %v1662 = vsel %vm1660, %v1649, %v1651
  %v1663 = vsel %vm1660, %v1651, %v1653
  %v1664 = vsel %vm1660, %v1653, %v1655
  %v1665 = vsel %vm1660, %v1655, %v1657
  %v1666 = vsel %vm1660, %v1657, %v1659
  %v1668 = vsel %vm52, %v1645, 0
  %v1670 = vsel %vm56, %v1661, 0
  %v1672 = vsel %vm56, %v1662, 0
  %v1674 = vsel %vm56, %v1663, 0
  %v1676 = vsel %vm56, %v1664, 0
  %v1678 = vsel %vm56, %v1665, 0
  %v1680 = vsel %vm56, %v1666, 0
  %v1682 = vsel %vm56, %v1659, 0
  %1684 = vmatprep.subr.mxu0 %v1672
  %1685 = vmatpush1.msra.mxu0 %v1670
  %1686 = vmatprep.subr.mxu0 0.0
  %1687 = vmatpush1.msra.mxu0 0.0
  %1688 = vmatprep.subr.mxu0 0.0
  %1689 = vmatpush1.msra.mxu0 0.0
  %1690 = vmatprep.subr.mxu0 0.0
  %1691 = vmatpush1.msra.mxu0 0.0
  %1692 = vmatprep.subr.mxu0 0.0
  %1693 = vmatpush1.msra.mxu0 0.0
  %1694 = vmatprep.subr.mxu0 0.0
  %1695 = vmatpush1.msra.mxu0 0.0
  %1696 = vmatprep.subr.mxu0 0.0
  %1697 = vmatpush1.msra.mxu0 0.0
  %1698 = vmatprep.subr.mxu0 0.0
  %1699 = vmatpush1.msra.mxu0 0.0
  %1700 = vmatprep.subr.mxu0 0.0
  %1701 = vmatpush1.msra.mxu0 0.0
  %1702 = vmatprep.subr.mxu0 0.0
  %1703 = vmatpush1.msra.mxu0 0.0
  %1704 = vmatprep.subr.mxu0 0.0
  %1705 = vmatpush1.msra.mxu0 0.0
  %1706 = vmatprep.subr.mxu0 0.0
  %1707 = vmatpush1.msra.mxu0 0.0
  %1708 = vmatprep.subr.mxu0 0.0
  %1709 = vmatpush1.msra.mxu0 0.0
  %1710 = vmatprep.subr.mxu0 0.0
  %1711 = vmatpush1.msra.mxu0 0.0
  %1712 = vmatprep.subr.mxu0 0.0
  %1713 = vmatpush1.msra.mxu0 0.0
  %1714 = vmatprep.subr.mxu0 0.0
  %1715 = vmatpush1.msra.mxu0 0.0
  %1716 = vmatprep.subr.mxu0 0.0
  %1717 = vmatpush1.msra.mxu0 0.0
  %1718 = vmatprep.subr.mxu0 0.0
  %1719 = vmatpush1.msra.mxu0 0.0
  %1720 = vmatprep.subr.mxu0 0.0
  %1721 = vmatpush1.msra.mxu0 0.0
  %1722 = vmatprep.subr.mxu0 0.0
  %1723 = vmatpush1.msra.mxu0 0.0
  %1724 = vmatprep.subr.mxu0 0.0
  %1725 = vmatpush1.msra.mxu0 0.0
  %1726 = vmatprep.subr.mxu0 0.0
  %1727 = vmatpush1.msra.mxu0 0.0
  %1728 = vmatprep.subr.mxu0 0.0
  %1729 = vmatpush1.msra.mxu0 0.0
  %1730 = vmatprep.subr.mxu0 0.0
  %1731 = vmatpush1.msra.mxu0 0.0
  %1732 = vmatprep.subr.mxu0 0.0
  %1733 = vmatpush1.msra.mxu0 0.0
  %1734 = vmatprep.subr.mxu0 0.0
  %1735 = vmatpush1.msra.mxu0 0.0
  %1736 = vmatprep.subr.mxu0 0.0
  %1737 = vmatpush1.msra.mxu0 0.0
  %1738 = vmatprep.subr.mxu0 0.0
  %1739 = vmatpush1.msra.mxu0 0.0
  %1740 = vmatprep.subr.mxu0 0.0
  %1741 = vmatpush1.msra.mxu0 0.0
  %1742 = vmatprep.subr.mxu0 0.0
  %1743 = vmatpush1.msra.mxu0 0.0
  %1744 = vmatprep.subr.mxu0 0.0
  %1745 = vmatpush1.msra.mxu0 0.0
  %1746 = vmatprep.subr.mxu0 0.0
  %1747 = vmatpush1.msra.mxu0 0.0
  %1748 = vmatprep.mubr.f32.mxu0 0.0
  %1749 = vmatmul.mubr.f32.gmra.mrb[0].mxu0 %v1668
  %v1750 = vpop.f32.mrb[0].mxu0
  %v1751 = vadd.f32 0.0, %v1750
  %v1752 = vpop.f32.mrb[0].mxu0
  %v1753 = vadd.f32 0.0, %v1752
  %1754 = vdwg.mxu0
  %1755 = vmatprep.subr.mxu0 %v1676
  %1756 = vmatpush1.msra.mxu0 %v1674
  %1757 = vmatprep.subr.mxu0 0.0
  %1758 = vmatpush1.msra.mxu0 0.0
  %1759 = vmatprep.subr.mxu0 0.0
  %1760 = vmatpush1.msra.mxu0 0.0
  %1761 = vmatprep.subr.mxu0 0.0
  %1762 = vmatpush1.msra.mxu0 0.0
  %1763 = vmatprep.subr.mxu0 0.0
  %1764 = vmatpush1.msra.mxu0 0.0
  %1765 = vmatprep.subr.mxu0 0.0
  %1766 = vmatpush1.msra.mxu0 0.0
  %1767 = vmatprep.subr.mxu0 0.0
  %1768 = vmatpush1.msra.mxu0 0.0
  %1769 = vmatprep.subr.mxu0 0.0
  %1770 = vmatpush1.msra.mxu0 0.0
  %1771 = vmatprep.subr.mxu0 0.0
  %1772 = vmatpush1.msra.mxu0 0.0
  %1773 = vmatprep.subr.mxu0 0.0
  %1774 = vmatpush1.msra.mxu0 0.0
  %1775 = vmatprep.subr.mxu0 0.0
  %1776 = vmatpush1.msra.mxu0 0.0
  %1777 = vmatprep.subr.mxu0 0.0
  %1778 = vmatpush1.msra.mxu0 0.0
  %1779 = vmatprep.subr.mxu0 0.0
  %1780 = vmatpush1.msra.mxu0 0.0
  %1781 = vmatprep.subr.mxu0 0.0
  %1782 = vmatpush1.msra.mxu0 0.0
  %1783 = vmatprep.subr.mxu0 0.0
  %1784 = vmatpush1.msra.mxu0 0.0
  %1785 = vmatprep.subr.mxu0 0.0
  %1786 = vmatpush1.msra.mxu0 0.0
  %1787 = vmatprep.subr.mxu0 0.0
  %1788 = vmatpush1.msra.mxu0 0.0
  %1789 = vmatprep.subr.mxu0 0.0
  %1790 = vmatpush1.msra.mxu0 0.0
  %1791 = vmatprep.subr.mxu0 0.0
  %1792 = vmatpush1.msra.mxu0 0.0
  %1793 = vmatprep.subr.mxu0 0.0
  %1794 = vmatpush1.msra.mxu0 0.0
  %1795 = vmatprep.subr.mxu0 0.0
  %1796 = vmatpush1.msra.mxu0 0.0
  %1797 = vmatprep.subr.mxu0 0.0
  %1798 = vmatpush1.msra.mxu0 0.0
  %1799 = vmatprep.subr.mxu0 0.0
  %1800 = vmatpush1.msra.mxu0 0.0
  %1801 = vmatprep.subr.mxu0 0.0
  %1802 = vmatpush1.msra.mxu0 0.0
  %1803 = vmatprep.subr.mxu0 0.0
  %1804 = vmatpush1.msra.mxu0 0.0
  %1805 = vmatprep.subr.mxu0 0.0
  %1806 = vmatpush1.msra.mxu0 0.0
  %1807 = vmatprep.subr.mxu0 0.0
  %1808 = vmatpush1.msra.mxu0 0.0
  %1809 = vmatprep.subr.mxu0 0.0
  %1810 = vmatpush1.msra.mxu0 0.0
  %1811 = vmatprep.subr.mxu0 0.0
  %1812 = vmatpush1.msra.mxu0 0.0
  %1813 = vmatprep.subr.mxu0 0.0
  %1814 = vmatpush1.msra.mxu0 0.0
  %1815 = vmatprep.subr.mxu0 0.0
  %1816 = vmatpush1.msra.mxu0 0.0
  %1817 = vmatprep.subr.mxu0 0.0
  %1818 = vmatpush1.msra.mxu0 0.0
  %1819 = vmatprep.mubr.f32.mxu0 0.0
  %1820 = vmatmul.mubr.f32.gmra.mrb[0].mxu0 %v1668
  %v1821 = vpop.f32.mrb[0].mxu0
  %v1822 = vadd.f32 0.0, %v1821
  %v1823 = vpop.f32.mrb[0].mxu0
  %v1824 = vadd.f32 0.0, %v1823
  %1825 = vdwg.mxu0
  %1826 = vmatprep.subr.mxu0 %v1680
  %1827 = vmatpush1.msra.mxu0 %v1678
  %1828 = vmatprep.subr.mxu0 0.0
  %1829 = vmatpush1.msra.mxu0 0.0
  %1830 = vmatprep.subr.mxu0 0.0
  %1831 = vmatpush1.msra.mxu0 0.0
  %1832 = vmatprep.subr.mxu0 0.0
  %1833 = vmatpush1.msra.mxu0 0.0
  %1834 = vmatprep.subr.mxu0 0.0
  %1835 = vmatpush1.msra.mxu0 0.0
  %1836 = vmatprep.subr.mxu0 0.0
  %1837 = vmatpush1.msra.mxu0 0.0
  %1838 = vmatprep.subr.mxu0 0.0
  %1839 = vmatpush1.msra.mxu0 0.0
  %1840 = vmatprep.subr.mxu0 0.0
  %1841 = vmatpush1.msra.mxu0 0.0
  %1842 = vmatprep.subr.mxu0 0.0
  %1843 = vmatpush1.msra.mxu0 0.0
  %1844 = vmatprep.subr.mxu0 0.0
  %1845 = vmatpush1.msra.mxu0 0.0
  %1846 = vmatprep.subr.mxu0 0.0
  %1847 = vmatpush1.msra.mxu0 0.0
  %1848 = vmatprep.subr.mxu0 0.0
  %1849 = vmatpush1.msra.mxu0 0.0
  %1850 = vmatprep.subr.mxu0 0.0
  %1851 = vmatpush1.msra.mxu0 0.0
  %1852 = vmatprep.subr.mxu0 0.0
  %1853 = vmatpush1.msra.mxu0 0.0
  %1854 = vmatprep.subr.mxu0 0.0
  %1855 = vmatpush1.msra.mxu0 0.0
  %1856 = vmatprep.subr.mxu0 0.0
  %1857 = vmatpush1.msra.mxu0 0.0
  %1858 = vmatprep.subr.mxu0 0.0
  %1859 = vmatpush1.msra.mxu0 0.0
  %1860 = vmatprep.subr.mxu0 0.0
  %1861 = vmatpush1.msra.mxu0 0.0
  %1862 = vmatprep.subr.mxu0 0.0
  %1863 = vmatpush1.msra.mxu0 0.0
  %1864 = vmatprep.subr.mxu0 0.0
  %1865 = vmatpush1.msra.mxu0 0.0
  %1866 = vmatprep.subr.mxu0 0.0
  %1867 = vmatpush1.msra.mxu0 0.0
  %1868 = vmatprep.subr.mxu0 0.0
  %1869 = vmatpush1.msra.mxu0 0.0
  %1870 = vmatprep.subr.mxu0 0.0
  %1871 = vmatpush1.msra.mxu0 0.0
  %1872 = vmatprep.subr.mxu0 0.0
  %1873 = vmatpush1.msra.mxu0 0.0
  %1874 = vmatprep.subr.mxu0 0.0
  %1875 = vmatpush1.msra.mxu0 0.0
  %1876 = vmatprep.subr.mxu0 0.0
  %1877 = vmatpush1.msra.mxu0 0.0
  %1878 = vmatprep.subr.mxu0 0.0
  %1879 = vmatpush1.msra.mxu0 0.0
  %1880 = vmatprep.subr.mxu0 0.0
  %1881 = vmatpush1.msra.mxu0 0.0
  %1882 = vmatprep.subr.mxu0 0.0
  %1883 = vmatpush1.msra.mxu0 0.0
  %1884 = vmatprep.subr.mxu0 0.0
  %1885 = vmatpush1.msra.mxu0 0.0
  %1886 = vmatprep.subr.mxu0 0.0
  %1887 = vmatpush1.msra.mxu0 0.0
  %1888 = vmatprep.subr.mxu0 0.0
  %1889 = vmatpush1.msra.mxu0 0.0
  %1890 = vmatprep.mubr.f32.mxu0 0.0
  %1891 = vmatmul.mubr.f32.gmra.mrb[0].mxu0 %v1668
  %v1892 = vpop.f32.mrb[0].mxu0
  %v1893 = vadd.f32 0.0, %v1892
  %v1894 = vpop.f32.mrb[0].mxu0
  %v1895 = vadd.f32 0.0, %v1894
  %1896 = vdwg.mxu0
  %1897 = vmatprep.subr.mxu0 0.0
  %1898 = vmatpush1.msra.mxu0 %v1682
  %1899 = vmatprep.subr.mxu0 0.0
  %1900 = vmatpush1.msra.mxu0 0.0
  %1901 = vmatprep.subr.mxu0 0.0
  %1902 = vmatpush1.msra.mxu0 0.0
  %1903 = vmatprep.subr.mxu0 0.0
  %1904 = vmatpush1.msra.mxu0 0.0
  %1905 = vmatprep.subr.mxu0 0.0
  %1906 = vmatpush1.msra.mxu0 0.0
  %1907 = vmatprep.subr.mxu0 0.0
  %1908 = vmatpush1.msra.mxu0 0.0
  %1909 = vmatprep.subr.mxu0 0.0
  %1910 = vmatpush1.msra.mxu0 0.0
  %1911 = vmatprep.subr.mxu0 0.0
  %1912 = vmatpush1.msra.mxu0 0.0
  %1913 = vmatprep.subr.mxu0 0.0
  %1914 = vmatpush1.msra.mxu0 0.0
  %1915 = vmatprep.subr.mxu0 0.0
  %1916 = vmatpush1.msra.mxu0 0.0
  %1917 = vmatprep.subr.mxu0 0.0
  %1918 = vmatpush1.msra.mxu0 0.0
  %1919 = vmatprep.subr.mxu0 0.0
  %1920 = vmatpush1.msra.mxu0 0.0
  %1921 = vmatprep.subr.mxu0 0.0
  %1922 = vmatpush1.msra.mxu0 0.0
  %1923 = vmatprep.subr.mxu0 0.0
  %1924 = vmatpush1.msra.mxu0 0.0
  %1925 = vmatprep.subr.mxu0 0.0
  %1926 = vmatpush1.msra.mxu0 0.0
  %1927 = vmatprep.subr.mxu0 0.0
  %1928 = vmatpush1.msra.mxu0 0.0
  %1929 = vmatprep.subr.mxu0 0.0
  %1930 = vmatpush1.msra.mxu0 0.0
  %1931 = vmatprep.subr.mxu0 0.0
  %1932 = vmatpush1.msra.mxu0 0.0
  %1933 = vmatprep.subr.mxu0 0.0
  %1934 = vmatpush1.msra.mxu0 0.0
  %1935 = vmatprep.subr.mxu0 0.0
  %1936 = vmatpush1.msra.mxu0 0.0
  %1937 = vmatprep.subr.mxu0 0.0
  %1938 = vmatpush1.msra.mxu0 0.0
  %1939 = vmatprep.subr.mxu0 0.0
  %1940 = vmatpush1.msra.mxu0 0.0
  %1941 = vmatprep.subr.mxu0 0.0
  %1942 = vmatpush1.msra.mxu0 0.0
  %1943 = vmatprep.subr.mxu0 0.0
  %1944 = vmatpush1.msra.mxu0 0.0
  %1945 = vmatprep.subr.mxu0 0.0
  %1946 = vmatpush1.msra.mxu0 0.0
  %1947 = vmatprep.subr.mxu0 0.0
  %1948 = vmatpush1.msra.mxu0 0.0
  %1949 = vmatprep.subr.mxu0 0.0
  %1950 = vmatpush1.msra.mxu0 0.0
  %1951 = vmatprep.subr.mxu0 0.0
  %1952 = vmatpush1.msra.mxu0 0.0
  %1953 = vmatprep.subr.mxu0 0.0
  %1954 = vmatpush1.msra.mxu0 0.0
  %1955 = vmatprep.subr.mxu0 0.0
  %1956 = vmatpush1.msra.mxu0 0.0
  %1957 = vmatprep.subr.mxu0 0.0
  %1958 = vmatpush1.msra.mxu0 0.0
  %1959 = vmatprep.subr.mxu0 0.0
  %1960 = vmatpush1.msra.mxu0 0.0
  %1961 = vmatprep.mubr.f32.mxu0 0.0
  %1962 = vmatmul.mubr.f32.gmra.mrb[0].mxu0 %v1668
  %v1963 = vpop.f32.mrb[0].mxu0
  %v1964 = vadd.f32 0.0, %v1963
  %v1965 = vpop.f32.mrb[0].mxu0
  %1966 = vdwg.mxu0
  %v1967 = vadd.f32 %v1637, %v1751
  %v1968 = vadd.f32 %v1638, %v1753
  %v1969 = vadd.f32 %v1639, %v1822
  %v1970 = vadd.f32 %v1640, %v1824
  %v1971 = vadd.f32 %v1641, %v1893
  %v1972 = vadd.f32 %v1642, %v1895
  %v1973 = vadd.f32 %v1643, %v1964
  %s1974 = scalar_lea.vmem %s1, 48
  %v1975 = vld [vmem:[%s1974] sm:$0xff]
  %1976 = vrot.lane.b32.xlu0 %v17, 48
  %v1977 = vpop.permute.xlu0 %1976
  %1978 = vrot.lane.b32.xlu0 %v28, 48
  %v1979 = vpop.permute.xlu0 %1978
  %1980 = vrot.lane.b32.xlu0 %v18, 48
  %v1981 = vpop.permute.xlu0 %1980
  %1982 = vrot.lane.b32.xlu0 %v29, 48
  %v1983 = vpop.permute.xlu0 %1982
  %1984 = vrot.lane.b32.xlu0 %v19, 48
  %v1985 = vpop.permute.xlu0 %1984
  %1986 = vrot.lane.b32.xlu0 %v30, 48
  %v1987 = vpop.permute.xlu0 %1986
  %1988 = vrot.lane.b32.xlu0 %v20, 48
  %v1989 = vpop.permute.xlu0 %1988
  %vm1990 = vcmask 392192
  %v1991 = vsel %vm1990, %v1977, %v1979
  %v1992 = vsel %vm1990, %v1979, %v1981
  %v1993 = vsel %vm1990, %v1981, %v1983
  %v1994 = vsel %vm1990, %v1983, %v1985
  %v1995 = vsel %vm1990, %v1985, %v1987
  %v1996 = vsel %vm1990, %v1987, %v1989
  %v1998 = vsel %vm52, %v1975, 0
  %v2000 = vsel %vm56, %v1991, 0
  %v2002 = vsel %vm56, %v1992, 0
  %v2004 = vsel %vm56, %v1993, 0
  %v2006 = vsel %vm56, %v1994, 0
  %v2008 = vsel %vm56, %v1995, 0
  %v2010 = vsel %vm56, %v1996, 0
  %v2012 = vsel %vm56, %v1989, 0
  %2014 = vmatprep.subr.mxu0 %v2002
  %2015 = vmatpush1.msra.mxu0 %v2000
  %2016 = vmatprep.subr.mxu0 0.0
  %2017 = vmatpush1.msra.mxu0 0.0
  %2018 = vmatprep.subr.mxu0 0.0
  %2019 = vmatpush1.msra.mxu0 0.0
  %2020 = vmatprep.subr.mxu0 0.0
  %2021 = vmatpush1.msra.mxu0 0.0
  %2022 = vmatprep.subr.mxu0 0.0
  %2023 = vmatpush1.msra.mxu0 0.0
  %2024 = vmatprep.subr.mxu0 0.0
  %2025 = vmatpush1.msra.mxu0 0.0
  %2026 = vmatprep.subr.mxu0 0.0
  %2027 = vmatpush1.msra.mxu0 0.0
  %2028 = vmatprep.subr.mxu0 0.0
  %2029 = vmatpush1.msra.mxu0 0.0
  %2030 = vmatprep.subr.mxu0 0.0
  %2031 = vmatpush1.msra.mxu0 0.0
  %2032 = vmatprep.subr.mxu0 0.0
  %2033 = vmatpush1.msra.mxu0 0.0
  %2034 = vmatprep.subr.mxu0 0.0
  %2035 = vmatpush1.msra.mxu0 0.0
  %2036 = vmatprep.subr.mxu0 0.0
  %2037 = vmatpush1.msra.mxu0 0.0
  %2038 = vmatprep.subr.mxu0 0.0
  %2039 = vmatpush1.msra.mxu0 0.0
  %2040 = vmatprep.subr.mxu0 0.0
  %2041 = vmatpush1.msra.mxu0 0.0
  %2042 = vmatprep.subr.mxu0 0.0
  %2043 = vmatpush1.msra.mxu0 0.0
  %2044 = vmatprep.subr.mxu0 0.0
  %2045 = vmatpush1.msra.mxu0 0.0
  %2046 = vmatprep.subr.mxu0 0.0
  %2047 = vmatpush1.msra.mxu0 0.0
  %2048 = vmatprep.subr.mxu0 0.0
  %2049 = vmatpush1.msra.mxu0 0.0
  %2050 = vmatprep.subr.mxu0 0.0
  %2051 = vmatpush1.msra.mxu0 0.0
  %2052 = vmatprep.subr.mxu0 0.0
  %2053 = vmatpush1.msra.mxu0 0.0
  %2054 = vmatprep.subr.mxu0 0.0
  %2055 = vmatpush1.msra.mxu0 0.0
  %2056 = vmatprep.subr.mxu0 0.0
  %2057 = vmatpush1.msra.mxu0 0.0
  %2058 = vmatprep.subr.mxu0 0.0
  %2059 = vmatpush1.msra.mxu0 0.0
  %2060 = vmatprep.subr.mxu0 0.0
  %2061 = vmatpush1.msra.mxu0 0.0
  %2062 = vmatprep.subr.mxu0 0.0
  %2063 = vmatpush1.msra.mxu0 0.0
  %2064 = vmatprep.subr.mxu0 0.0
  %2065 = vmatpush1.msra.mxu0 0.0
  %2066 = vmatprep.subr.mxu0 0.0
  %2067 = vmatpush1.msra.mxu0 0.0
  %2068 = vmatprep.subr.mxu0 0.0
  %2069 = vmatpush1.msra.mxu0 0.0
  %2070 = vmatprep.subr.mxu0 0.0
  %2071 = vmatpush1.msra.mxu0 0.0
  %2072 = vmatprep.subr.mxu0 0.0
  %2073 = vmatpush1.msra.mxu0 0.0
  %2074 = vmatprep.subr.mxu0 0.0
  %2075 = vmatpush1.msra.mxu0 0.0
  %2076 = vmatprep.subr.mxu0 0.0
  %2077 = vmatpush1.msra.mxu0 0.0
  %2078 = vmatprep.mubr.f32.mxu0 0.0
  %2079 = vmatmul.mubr.f32.gmra.mrb[0].mxu0 %v1998
  %v2080 = vpop.f32.mrb[0].mxu0
  %v2081 = vadd.f32 0.0, %v2080
  %v2082 = vpop.f32.mrb[0].mxu0
  %v2083 = vadd.f32 0.0, %v2082
  %2084 = vdwg.mxu0
  %2085 = vmatprep.subr.mxu0 %v2006
  %2086 = vmatpush1.msra.mxu0 %v2004
  %2087 = vmatprep.subr.mxu0 0.0
  %2088 = vmatpush1.msra.mxu0 0.0
  %2089 = vmatprep.subr.mxu0 0.0
  %2090 = vmatpush1.msra.mxu0 0.0
  %2091 = vmatprep.subr.mxu0 0.0
  %2092 = vmatpush1.msra.mxu0 0.0
  %2093 = vmatprep.subr.mxu0 0.0
  %2094 = vmatpush1.msra.mxu0 0.0
  %2095 = vmatprep.subr.mxu0 0.0
  %2096 = vmatpush1.msra.mxu0 0.0
  %2097 = vmatprep.subr.mxu0 0.0
  %2098 = vmatpush1.msra.mxu0 0.0
  %2099 = vmatprep.subr.mxu0 0.0
  %2100 = vmatpush1.msra.mxu0 0.0
  %2101 = vmatprep.subr.mxu0 0.0
  %2102 = vmatpush1.msra.mxu0 0.0
  %2103 = vmatprep.subr.mxu0 0.0
  %2104 = vmatpush1.msra.mxu0 0.0
  %2105 = vmatprep.subr.mxu0 0.0
  %2106 = vmatpush1.msra.mxu0 0.0
  %2107 = vmatprep.subr.mxu0 0.0
  %2108 = vmatpush1.msra.mxu0 0.0
  %2109 = vmatprep.subr.mxu0 0.0
  %2110 = vmatpush1.msra.mxu0 0.0
  %2111 = vmatprep.subr.mxu0 0.0
  %2112 = vmatpush1.msra.mxu0 0.0
  %2113 = vmatprep.subr.mxu0 0.0
  %2114 = vmatpush1.msra.mxu0 0.0
  %2115 = vmatprep.subr.mxu0 0.0
  %2116 = vmatpush1.msra.mxu0 0.0
  %2117 = vmatprep.subr.mxu0 0.0
  %2118 = vmatpush1.msra.mxu0 0.0
  %2119 = vmatprep.subr.mxu0 0.0
  %2120 = vmatpush1.msra.mxu0 0.0
  %2121 = vmatprep.subr.mxu0 0.0
  %2122 = vmatpush1.msra.mxu0 0.0
  %2123 = vmatprep.subr.mxu0 0.0
  %2124 = vmatpush1.msra.mxu0 0.0
  %2125 = vmatprep.subr.mxu0 0.0
  %2126 = vmatpush1.msra.mxu0 0.0
  %2127 = vmatprep.subr.mxu0 0.0
  %2128 = vmatpush1.msra.mxu0 0.0
  %2129 = vmatprep.subr.mxu0 0.0
  %2130 = vmatpush1.msra.mxu0 0.0
  %2131 = vmatprep.subr.mxu0 0.0
  %2132 = vmatpush1.msra.mxu0 0.0
  %2133 = vmatprep.subr.mxu0 0.0
  %2134 = vmatpush1.msra.mxu0 0.0
  %2135 = vmatprep.subr.mxu0 0.0
  %2136 = vmatpush1.msra.mxu0 0.0
  %2137 = vmatprep.subr.mxu0 0.0
  %2138 = vmatpush1.msra.mxu0 0.0
  %2139 = vmatprep.subr.mxu0 0.0
  %2140 = vmatpush1.msra.mxu0 0.0
  %2141 = vmatprep.subr.mxu0 0.0
  %2142 = vmatpush1.msra.mxu0 0.0
  %2143 = vmatprep.subr.mxu0 0.0
  %2144 = vmatpush1.msra.mxu0 0.0
  %2145 = vmatprep.subr.mxu0 0.0
  %2146 = vmatpush1.msra.mxu0 0.0
  %2147 = vmatprep.subr.mxu0 0.0
  %2148 = vmatpush1.msra.mxu0 0.0
  %2149 = vmatprep.mubr.f32.mxu0 0.0
  %2150 = vmatmul.mubr.f32.gmra.mrb[0].mxu0 %v1998
  %v2151 = vpop.f32.mrb[0].mxu0
  %v2152 = vadd.f32 0.0, %v2151
  %v2153 = vpop.f32.mrb[0].mxu0
  %v2154 = vadd.f32 0.0, %v2153
  %2155 = vdwg.mxu0
  %2156 = vmatprep.subr.mxu0 %v2010
  %2157 = vmatpush1.msra.mxu0 %v2008
  %2158 = vmatprep.subr.mxu0 0.0
  %2159 = vmatpush1.msra.mxu0 0.0
  %2160 = vmatprep.subr.mxu0 0.0
  %2161 = vmatpush1.msra.mxu0 0.0
  %2162 = vmatprep.subr.mxu0 0.0
  %2163 = vmatpush1.msra.mxu0 0.0
  %2164 = vmatprep.subr.mxu0 0.0
  %2165 = vmatpush1.msra.mxu0 0.0
  %2166 = vmatprep.subr.mxu0 0.0
  %2167 = vmatpush1.msra.mxu0 0.0
  %2168 = vmatprep.subr.mxu0 0.0
  %2169 = vmatpush1.msra.mxu0 0.0
  %2170 = vmatprep.subr.mxu0 0.0
  %2171 = vmatpush1.msra.mxu0 0.0
  %2172 = vmatprep.subr.mxu0 0.0
  %2173 = vmatpush1.msra.mxu0 0.0
  %2174 = vmatprep.subr.mxu0 0.0
  %2175 = vmatpush1.msra.mxu0 0.0
  %2176 = vmatprep.subr.mxu0 0.0
  %2177 = vmatpush1.msra.mxu0 0.0
  %2178 = vmatprep.subr.mxu0 0.0
  %2179 = vmatpush1.msra.mxu0 0.0
  %2180 = vmatprep.subr.mxu0 0.0
  %2181 = vmatpush1.msra.mxu0 0.0
  %2182 = vmatprep.subr.mxu0 0.0
  %2183 = vmatpush1.msra.mxu0 0.0
  %2184 = vmatprep.subr.mxu0 0.0
  %2185 = vmatpush1.msra.mxu0 0.0
  %2186 = vmatprep.subr.mxu0 0.0
  %2187 = vmatpush1.msra.mxu0 0.0
  %2188 = vmatprep.subr.mxu0 0.0
  %2189 = vmatpush1.msra.mxu0 0.0
  %2190 = vmatprep.subr.mxu0 0.0
  %2191 = vmatpush1.msra.mxu0 0.0
  %2192 = vmatprep.subr.mxu0 0.0
  %2193 = vmatpush1.msra.mxu0 0.0
  %2194 = vmatprep.subr.mxu0 0.0
  %2195 = vmatpush1.msra.mxu0 0.0
  %2196 = vmatprep.subr.mxu0 0.0
  %2197 = vmatpush1.msra.mxu0 0.0
  %2198 = vmatprep.subr.mxu0 0.0
  %2199 = vmatpush1.msra.mxu0 0.0
  %2200 = vmatprep.subr.mxu0 0.0
  %2201 = vmatpush1.msra.mxu0 0.0
  %2202 = vmatprep.subr.mxu0 0.0
  %2203 = vmatpush1.msra.mxu0 0.0
  %2204 = vmatprep.subr.mxu0 0.0
  %2205 = vmatpush1.msra.mxu0 0.0
  %2206 = vmatprep.subr.mxu0 0.0
  %2207 = vmatpush1.msra.mxu0 0.0
  %2208 = vmatprep.subr.mxu0 0.0
  %2209 = vmatpush1.msra.mxu0 0.0
  %2210 = vmatprep.subr.mxu0 0.0
  %2211 = vmatpush1.msra.mxu0 0.0
  %2212 = vmatprep.subr.mxu0 0.0
  %2213 = vmatpush1.msra.mxu0 0.0
  %2214 = vmatprep.subr.mxu0 0.0
  %2215 = vmatpush1.msra.mxu0 0.0
  %2216 = vmatprep.subr.mxu0 0.0
  %2217 = vmatpush1.msra.mxu0 0.0
  %2218 = vmatprep.subr.mxu0 0.0
  %2219 = vmatpush1.msra.mxu0 0.0
  %2220 = vmatprep.mubr.f32.mxu0 0.0
  %2221 = vmatmul.mubr.f32.gmra.mrb[0].mxu0 %v1998
  %v2222 = vpop.f32.mrb[0].mxu0
  %v2223 = vadd.f32 0.0, %v2222
  %v2224 = vpop.f32.mrb[0].mxu0
  %v2225 = vadd.f32 0.0, %v2224
  %2226 = vdwg.mxu0
  %2227 = vmatprep.subr.mxu0 0.0
  %2228 = vmatpush1.msra.mxu0 %v2012
  %2229 = vmatprep.subr.mxu0 0.0
  %2230 = vmatpush1.msra.mxu0 0.0
  %2231 = vmatprep.subr.mxu0 0.0
  %2232 = vmatpush1.msra.mxu0 0.0
  %2233 = vmatprep.subr.mxu0 0.0
  %2234 = vmatpush1.msra.mxu0 0.0
  %2235 = vmatprep.subr.mxu0 0.0
  %2236 = vmatpush1.msra.mxu0 0.0
  %2237 = vmatprep.subr.mxu0 0.0
  %2238 = vmatpush1.msra.mxu0 0.0
  %2239 = vmatprep.subr.mxu0 0.0
  %2240 = vmatpush1.msra.mxu0 0.0
  %2241 = vmatprep.subr.mxu0 0.0
  %2242 = vmatpush1.msra.mxu0 0.0
  %2243 = vmatprep.subr.mxu0 0.0
  %2244 = vmatpush1.msra.mxu0 0.0
  %2245 = vmatprep.subr.mxu0 0.0
  %2246 = vmatpush1.msra.mxu0 0.0
  %2247 = vmatprep.subr.mxu0 0.0
  %2248 = vmatpush1.msra.mxu0 0.0
  %2249 = vmatprep.subr.mxu0 0.0
  %2250 = vmatpush1.msra.mxu0 0.0
  %2251 = vmatprep.subr.mxu0 0.0
  %2252 = vmatpush1.msra.mxu0 0.0
  %2253 = vmatprep.subr.mxu0 0.0
  %2254 = vmatpush1.msra.mxu0 0.0
  %2255 = vmatprep.subr.mxu0 0.0
  %2256 = vmatpush1.msra.mxu0 0.0
  %2257 = vmatprep.subr.mxu0 0.0
  %2258 = vmatpush1.msra.mxu0 0.0
  %2259 = vmatprep.subr.mxu0 0.0
  %2260 = vmatpush1.msra.mxu0 0.0
  %2261 = vmatprep.subr.mxu0 0.0
  %2262 = vmatpush1.msra.mxu0 0.0
  %2263 = vmatprep.subr.mxu0 0.0
  %2264 = vmatpush1.msra.mxu0 0.0
  %2265 = vmatprep.subr.mxu0 0.0
  %2266 = vmatpush1.msra.mxu0 0.0
  %2267 = vmatprep.subr.mxu0 0.0
  %2268 = vmatpush1.msra.mxu0 0.0
  %2269 = vmatprep.subr.mxu0 0.0
  %2270 = vmatpush1.msra.mxu0 0.0
  %2271 = vmatprep.subr.mxu0 0.0
  %2272 = vmatpush1.msra.mxu0 0.0
  %2273 = vmatprep.subr.mxu0 0.0
  %2274 = vmatpush1.msra.mxu0 0.0
  %2275 = vmatprep.subr.mxu0 0.0
  %2276 = vmatpush1.msra.mxu0 0.0
  %2277 = vmatprep.subr.mxu0 0.0
  %2278 = vmatpush1.msra.mxu0 0.0
  %2279 = vmatprep.subr.mxu0 0.0
  %2280 = vmatpush1.msra.mxu0 0.0
  %2281 = vmatprep.subr.mxu0 0.0
  %2282 = vmatpush1.msra.mxu0 0.0
  %2283 = vmatprep.subr.mxu0 0.0
  %2284 = vmatpush1.msra.mxu0 0.0
  %2285 = vmatprep.subr.mxu0 0.0
  %2286 = vmatpush1.msra.mxu0 0.0
  %2287 = vmatprep.subr.mxu0 0.0
  %2288 = vmatpush1.msra.mxu0 0.0
  %2289 = vmatprep.subr.mxu0 0.0
  %2290 = vmatpush1.msra.mxu0 0.0
  %2291 = vmatprep.mubr.f32.mxu0 0.0
  %2292 = vmatmul.mubr.f32.gmra.mrb[0].mxu0 %v1998
  %v2293 = vpop.f32.mrb[0].mxu0
  %v2294 = vadd.f32 0.0, %v2293
  %v2295 = vpop.f32.mrb[0].mxu0
  %2296 = vdwg.mxu0
  %v2297 = vadd.f32 %v1967, %v2081
  %v2298 = vadd.f32 %v1968, %v2083
  %v2299 = vadd.f32 %v1969, %v2152
  %v2300 = vadd.f32 %v1970, %v2154
  %v2301 = vadd.f32 %v1971, %v2223
  %v2302 = vadd.f32 %v1972, %v2225
  %v2303 = vadd.f32 %v1973, %v2294
  %s2304 = scalar_lea.vmem %s1, 56
  %v2305 = vld [vmem:[%s2304] sm:$0xff]
  %2306 = vrot.lane.b32.xlu0 %v17, 46
  %v2307 = vpop.permute.xlu0 %2306
  %2308 = vrot.lane.b32.xlu0 %v28, 46
  %v2309 = vpop.permute.xlu0 %2308
  %2310 = vrot.lane.b32.xlu0 %v18, 46
  %v2311 = vpop.permute.xlu0 %2310
  %2312 = vrot.lane.b32.xlu0 %v29, 46
  %v2313 = vpop.permute.xlu0 %2312
  %2314 = vrot.lane.b32.xlu0 %v19, 46
  %v2315 = vpop.permute.xlu0 %2314
  %2316 = vrot.lane.b32.xlu0 %v30, 46
  %v2317 = vpop.permute.xlu0 %2316
  %2318 = vrot.lane.b32.xlu0 %v20, 46
  %v2319 = vpop.permute.xlu0 %2318
  %vm2320 = vcmask 375808
  %v2321 = vsel %vm2320, %v2307, %v2309
  %v2322 = vsel %vm2320, %v2309, %v2311
  %v2323 = vsel %vm2320, %v2311, %v2313
  %v2324 = vsel %vm2320, %v2313, %v2315
  %v2325 = vsel %vm2320, %v2315, %v2317
  %v2326 = vsel %vm2320, %v2317, %v2319
  %v2328 = vsel %vm52, %v2305, 0
  %v2330 = vsel %vm56, %v2321, 0
  %v2332 = vsel %vm56, %v2322, 0
  %v2334 = vsel %vm56, %v2323, 0
  %v2336 = vsel %vm56, %v2324, 0
  %v2338 = vsel %vm56, %v2325, 0
  %v2340 = vsel %vm56, %v2326, 0
  %v2342 = vsel %vm56, %v2319, 0
  %2344 = vmatprep.subr.mxu0 %v2332
  %2345 = vmatpush1.msra.mxu0 %v2330
  %2346 = vmatprep.subr.mxu0 0.0
  %2347 = vmatpush1.msra.mxu0 0.0
  %2348 = vmatprep.subr.mxu0 0.0
  %2349 = vmatpush1.msra.mxu0 0.0
  %2350 = vmatprep.subr.mxu0 0.0
  %2351 = vmatpush1.msra.mxu0 0.0
  %2352 = vmatprep.subr.mxu0 0.0
  %2353 = vmatpush1.msra.mxu0 0.0
  %2354 = vmatprep.subr.mxu0 0.0
  %2355 = vmatpush1.msra.mxu0 0.0
  %2356 = vmatprep.subr.mxu0 0.0
  %2357 = vmatpush1.msra.mxu0 0.0
  %2358 = vmatprep.subr.mxu0 0.0
  %2359 = vmatpush1.msra.mxu0 0.0
  %2360 = vmatprep.subr.mxu0 0.0
  %2361 = vmatpush1.msra.mxu0 0.0
  %2362 = vmatprep.subr.mxu0 0.0
  %2363 = vmatpush1.msra.mxu0 0.0
  %2364 = vmatprep.subr.mxu0 0.0
  %2365 = vmatpush1.msra.mxu0 0.0
  %2366 = vmatprep.subr.mxu0 0.0
  %2367 = vmatpush1.msra.mxu0 0.0
  %2368 = vmatprep.subr.mxu0 0.0
  %2369 = vmatpush1.msra.mxu0 0.0
  %2370 = vmatprep.subr.mxu0 0.0
  %2371 = vmatpush1.msra.mxu0 0.0
  %2372 = vmatprep.subr.mxu0 0.0
  %2373 = vmatpush1.msra.mxu0 0.0
  %2374 = vmatprep.subr.mxu0 0.0
  %2375 = vmatpush1.msra.mxu0 0.0
  %2376 = vmatprep.subr.mxu0 0.0
  %2377 = vmatpush1.msra.mxu0 0.0
  %2378 = vmatprep.subr.mxu0 0.0
  %2379 = vmatpush1.msra.mxu0 0.0
  %2380 = vmatprep.subr.mxu0 0.0
  %2381 = vmatpush1.msra.mxu0 0.0
  %2382 = vmatprep.subr.mxu0 0.0
  %2383 = vmatpush1.msra.mxu0 0.0
  %2384 = vmatprep.subr.mxu0 0.0
  %2385 = vmatpush1.msra.mxu0 0.0
  %2386 = vmatprep.subr.mxu0 0.0
  %2387 = vmatpush1.msra.mxu0 0.0
  %2388 = vmatprep.subr.mxu0 0.0
  %2389 = vmatpush1.msra.mxu0 0.0
  %2390 = vmatprep.subr.mxu0 0.0
  %2391 = vmatpush1.msra.mxu0 0.0
  %2392 = vmatprep.subr.mxu0 0.0
  %2393 = vmatpush1.msra.mxu0 0.0
  %2394 = vmatprep.subr.mxu0 0.0
  %2395 = vmatpush1.msra.mxu0 0.0
  %2396 = vmatprep.subr.mxu0 0.0
  %2397 = vmatpush1.msra.mxu0 0.0
  %2398 = vmatprep.subr.mxu0 0.0
  %2399 = vmatpush1.msra.mxu0 0.0
  %2400 = vmatprep.subr.mxu0 0.0
  %2401 = vmatpush1.msra.mxu0 0.0
  %2402 = vmatprep.subr.mxu0 0.0
  %2403 = vmatpush1.msra.mxu0 0.0
  %2404 = vmatprep.subr.mxu0 0.0
  %2405 = vmatpush1.msra.mxu0 0.0
  %2406 = vmatprep.subr.mxu0 0.0
  %2407 = vmatpush1.msra.mxu0 0.0
  %2408 = vmatprep.mubr.f32.mxu0 0.0
  %2409 = vmatmul.mubr.f32.gmra.mrb[0].mxu0 %v2328
  %v2410 = vpop.f32.mrb[0].mxu0
  %v2411 = vadd.f32 0.0, %v2410
  %v2412 = vpop.f32.mrb[0].mxu0
  %v2413 = vadd.f32 0.0, %v2412
  %2414 = vdwg.mxu0
  %2415 = vmatprep.subr.mxu0 %v2336
  %2416 = vmatpush1.msra.mxu0 %v2334
  %2417 = vmatprep.subr.mxu0 0.0
  %2418 = vmatpush1.msra.mxu0 0.0
  %2419 = vmatprep.subr.mxu0 0.0
  %2420 = vmatpush1.msra.mxu0 0.0
  %2421 = vmatprep.subr.mxu0 0.0
  %2422 = vmatpush1.msra.mxu0 0.0
  %2423 = vmatprep.subr.mxu0 0.0
  %2424 = vmatpush1.msra.mxu0 0.0
  %2425 = vmatprep.subr.mxu0 0.0
  %2426 = vmatpush1.msra.mxu0 0.0
  %2427 = vmatprep.subr.mxu0 0.0
  %2428 = vmatpush1.msra.mxu0 0.0
  %2429 = vmatprep.subr.mxu0 0.0
  %2430 = vmatpush1.msra.mxu0 0.0
  %2431 = vmatprep.subr.mxu0 0.0
  %2432 = vmatpush1.msra.mxu0 0.0
  %2433 = vmatprep.subr.mxu0 0.0
  %2434 = vmatpush1.msra.mxu0 0.0
  %2435 = vmatprep.subr.mxu0 0.0
  %2436 = vmatpush1.msra.mxu0 0.0
  %2437 = vmatprep.subr.mxu0 0.0
  %2438 = vmatpush1.msra.mxu0 0.0
  %2439 = vmatprep.subr.mxu0 0.0
  %2440 = vmatpush1.msra.mxu0 0.0
  %2441 = vmatprep.subr.mxu0 0.0
  %2442 = vmatpush1.msra.mxu0 0.0
  %2443 = vmatprep.subr.mxu0 0.0
  %2444 = vmatpush1.msra.mxu0 0.0
  %2445 = vmatprep.subr.mxu0 0.0
  %2446 = vmatpush1.msra.mxu0 0.0
  %2447 = vmatprep.subr.mxu0 0.0
  %2448 = vmatpush1.msra.mxu0 0.0
  %2449 = vmatprep.subr.mxu0 0.0
  %2450 = vmatpush1.msra.mxu0 0.0
  %2451 = vmatprep.subr.mxu0 0.0
  %2452 = vmatpush1.msra.mxu0 0.0
  %2453 = vmatprep.subr.mxu0 0.0
  %2454 = vmatpush1.msra.mxu0 0.0
  %2455 = vmatprep.subr.mxu0 0.0
  %2456 = vmatpush1.msra.mxu0 0.0
  %2457 = vmatprep.subr.mxu0 0.0
  %2458 = vmatpush1.msra.mxu0 0.0
  %2459 = vmatprep.subr.mxu0 0.0
  %2460 = vmatpush1.msra.mxu0 0.0
  %2461 = vmatprep.subr.mxu0 0.0
  %2462 = vmatpush1.msra.mxu0 0.0
  %2463 = vmatprep.subr.mxu0 0.0
  %2464 = vmatpush1.msra.mxu0 0.0
  %2465 = vmatprep.subr.mxu0 0.0
  %2466 = vmatpush1.msra.mxu0 0.0
  %2467 = vmatprep.subr.mxu0 0.0
  %2468 = vmatpush1.msra.mxu0 0.0
  %2469 = vmatprep.subr.mxu0 0.0
  %2470 = vmatpush1.msra.mxu0 0.0
  %2471 = vmatprep.subr.mxu0 0.0
  %2472 = vmatpush1.msra.mxu0 0.0
  %2473 = vmatprep.subr.mxu0 0.0
  %2474 = vmatpush1.msra.mxu0 0.0
  %2475 = vmatprep.subr.mxu0 0.0
  %2476 = vmatpush1.msra.mxu0 0.0
  %2477 = vmatprep.subr.mxu0 0.0
  %2478 = vmatpush1.msra.mxu0 0.0
  %2479 = vmatprep.mubr.f32.mxu0 0.0
  %2480 = vmatmul.mubr.f32.gmra.mrb[0].mxu0 %v2328
  %v2481 = vpop.f32.mrb[0].mxu0
  %v2482 = vadd.f32 0.0, %v2481
  %v2483 = vpop.f32.mrb[0].mxu0
  %v2484 = vadd.f32 0.0, %v2483
  %2485 = vdwg.mxu0
  %2486 = vmatprep.subr.mxu0 %v2340
  %2487 = vmatpush1.msra.mxu0 %v2338
  %2488 = vmatprep.subr.mxu0 0.0
  %2489 = vmatpush1.msra.mxu0 0.0
  %2490 = vmatprep.subr.mxu0 0.0
  %2491 = vmatpush1.msra.mxu0 0.0
  %2492 = vmatprep.subr.mxu0 0.0
  %2493 = vmatpush1.msra.mxu0 0.0
  %2494 = vmatprep.subr.mxu0 0.0
  %2495 = vmatpush1.msra.mxu0 0.0
  %2496 = vmatprep.subr.mxu0 0.0
  %2497 = vmatpush1.msra.mxu0 0.0
  %2498 = vmatprep.subr.mxu0 0.0
  %2499 = vmatpush1.msra.mxu0 0.0
  %2500 = vmatprep.subr.mxu0 0.0
  %2501 = vmatpush1.msra.mxu0 0.0
  %2502 = vmatprep.subr.mxu0 0.0
  %2503 = vmatpush1.msra.mxu0 0.0
  %2504 = vmatprep.subr.mxu0 0.0
  %2505 = vmatpush1.msra.mxu0 0.0
  %2506 = vmatprep.subr.mxu0 0.0
  %2507 = vmatpush1.msra.mxu0 0.0
  %2508 = vmatprep.subr.mxu0 0.0
  %2509 = vmatpush1.msra.mxu0 0.0
  %2510 = vmatprep.subr.mxu0 0.0
  %2511 = vmatpush1.msra.mxu0 0.0
  %2512 = vmatprep.subr.mxu0 0.0
  %2513 = vmatpush1.msra.mxu0 0.0
  %2514 = vmatprep.subr.mxu0 0.0
  %2515 = vmatpush1.msra.mxu0 0.0
  %2516 = vmatprep.subr.mxu0 0.0
  %2517 = vmatpush1.msra.mxu0 0.0
  %2518 = vmatprep.subr.mxu0 0.0
  %2519 = vmatpush1.msra.mxu0 0.0
  %2520 = vmatprep.subr.mxu0 0.0
  %2521 = vmatpush1.msra.mxu0 0.0
  %2522 = vmatprep.subr.mxu0 0.0
  %2523 = vmatpush1.msra.mxu0 0.0
  %2524 = vmatprep.subr.mxu0 0.0
  %2525 = vmatpush1.msra.mxu0 0.0
  %2526 = vmatprep.subr.mxu0 0.0
  %2527 = vmatpush1.msra.mxu0 0.0
  %2528 = vmatprep.subr.mxu0 0.0
  %2529 = vmatpush1.msra.mxu0 0.0
  %2530 = vmatprep.subr.mxu0 0.0
  %2531 = vmatpush1.msra.mxu0 0.0
  %2532 = vmatprep.subr.mxu0 0.0
  %2533 = vmatpush1.msra.mxu0 0.0
  %2534 = vmatprep.subr.mxu0 0.0
  %2535 = vmatpush1.msra.mxu0 0.0
  %2536 = vmatprep.subr.mxu0 0.0
  %2537 = vmatpush1.msra.mxu0 0.0
  %2538 = vmatprep.subr.mxu0 0.0
  %2539 = vmatpush1.msra.mxu0 0.0
  %2540 = vmatprep.subr.mxu0 0.0
  %2541 = vmatpush1.msra.mxu0 0.0
  %2542 = vmatprep.subr.mxu0 0.0
  %2543 = vmatpush1.msra.mxu0 0.0
  %2544 = vmatprep.subr.mxu0 0.0
  %2545 = vmatpush1.msra.mxu0 0.0
  %2546 = vmatprep.subr.mxu0 0.0
  %2547 = vmatpush1.msra.mxu0 0.0
  %2548 = vmatprep.subr.mxu0 0.0
  %2549 = vmatpush1.msra.mxu0 0.0
  %2550 = vmatprep.mubr.f32.mxu0 0.0
  %2551 = vmatmul.mubr.f32.gmra.mrb[0].mxu0 %v2328
  %v2552 = vpop.f32.mrb[0].mxu0
  %v2553 = vadd.f32 0.0, %v2552
  %v2554 = vpop.f32.mrb[0].mxu0
  %v2555 = vadd.f32 0.0, %v2554
  %2556 = vdwg.mxu0
  %2557 = vmatprep.subr.mxu0 0.0
  %2558 = vmatpush1.msra.mxu0 %v2342
  %2559 = vmatprep.subr.mxu0 0.0
  %2560 = vmatpush1.msra.mxu0 0.0
  %2561 = vmatprep.subr.mxu0 0.0
  %2562 = vmatpush1.msra.mxu0 0.0
  %2563 = vmatprep.subr.mxu0 0.0
  %2564 = vmatpush1.msra.mxu0 0.0
  %2565 = vmatprep.subr.mxu0 0.0
  %2566 = vmatpush1.msra.mxu0 0.0
  %2567 = vmatprep.subr.mxu0 0.0
  %2568 = vmatpush1.msra.mxu0 0.0
  %2569 = vmatprep.subr.mxu0 0.0
  %2570 = vmatpush1.msra.mxu0 0.0
  %2571 = vmatprep.subr.mxu0 0.0
  %2572 = vmatpush1.msra.mxu0 0.0
  %2573 = vmatprep.subr.mxu0 0.0
  %2574 = vmatpush1.msra.mxu0 0.0
  %2575 = vmatprep.subr.mxu0 0.0
  %2576 = vmatpush1.msra.mxu0 0.0
  %2577 = vmatprep.subr.mxu0 0.0
  %2578 = vmatpush1.msra.mxu0 0.0
  %2579 = vmatprep.subr.mxu0 0.0
  %2580 = vmatpush1.msra.mxu0 0.0
  %2581 = vmatprep.subr.mxu0 0.0
  %2582 = vmatpush1.msra.mxu0 0.0
  %2583 = vmatprep.subr.mxu0 0.0
  %2584 = vmatpush1.msra.mxu0 0.0
  %2585 = vmatprep.subr.mxu0 0.0
  %2586 = vmatpush1.msra.mxu0 0.0
  %2587 = vmatprep.subr.mxu0 0.0
  %2588 = vmatpush1.msra.mxu0 0.0
  %2589 = vmatprep.subr.mxu0 0.0
  %2590 = vmatpush1.msra.mxu0 0.0
  %2591 = vmatprep.subr.mxu0 0.0
  %2592 = vmatpush1.msra.mxu0 0.0
  %2593 = vmatprep.subr.mxu0 0.0
  %2594 = vmatpush1.msra.mxu0 0.0
  %2595 = vmatprep.subr.mxu0 0.0
  %2596 = vmatpush1.msra.mxu0 0.0
  %2597 = vmatprep.subr.mxu0 0.0
  %2598 = vmatpush1.msra.mxu0 0.0
  %2599 = vmatprep.subr.mxu0 0.0
  %2600 = vmatpush1.msra.mxu0 0.0
  %2601 = vmatprep.subr.mxu0 0.0
  %2602 = vmatpush1.msra.mxu0 0.0
  %2603 = vmatprep.subr.mxu0 0.0
  %2604 = vmatpush1.msra.mxu0 0.0
  %2605 = vmatprep.subr.mxu0 0.0
  %2606 = vmatpush1.msra.mxu0 0.0
  %2607 = vmatprep.subr.mxu0 0.0
  %2608 = vmatpush1.msra.mxu0 0.0
  %2609 = vmatprep.subr.mxu0 0.0
  %2610 = vmatpush1.msra.mxu0 0.0
  %2611 = vmatprep.subr.mxu0 0.0
  %2612 = vmatpush1.msra.mxu0 0.0
  %2613 = vmatprep.subr.mxu0 0.0
  %2614 = vmatpush1.msra.mxu0 0.0
  %2615 = vmatprep.subr.mxu0 0.0
  %2616 = vmatpush1.msra.mxu0 0.0
  %2617 = vmatprep.subr.mxu0 0.0
  %2618 = vmatpush1.msra.mxu0 0.0
  %2619 = vmatprep.subr.mxu0 0.0
  %2620 = vmatpush1.msra.mxu0 0.0
  %2621 = vmatprep.mubr.f32.mxu0 0.0
  %2622 = vmatmul.mubr.f32.gmra.mrb[0].mxu0 %v2328
  %v2623 = vpop.f32.mrb[0].mxu0
  %v2624 = vadd.f32 0.0, %v2623
  %v2625 = vpop.f32.mrb[0].mxu0
  %2626 = vdwg.mxu0
  %v2627 = vadd.f32 %v2297, %v2411
  %v2628 = vadd.f32 %v2298, %v2413
  %v2629 = vadd.f32 %v2299, %v2482
  %v2630 = vadd.f32 %v2300, %v2484
  %v2631 = vadd.f32 %v2301, %v2553
  %v2632 = vadd.f32 %v2302, %v2555
  %v2633 = vadd.f32 %v2303, %v2624
  %s2634 = scalar_lea.vmem %s1, 64
  %v2635 = vld [vmem:[%s2634] sm:$0xff]
  %2636 = vrot.lane.b32.xlu0 %v17, 44
  %v2637 = vpop.permute.xlu0 %2636
  %2638 = vrot.lane.b32.xlu0 %v28, 44
  %v2639 = vpop.permute.xlu0 %2638
  %2640 = vrot.lane.b32.xlu0 %v18, 44
  %v2641 = vpop.permute.xlu0 %2640
  %2642 = vrot.lane.b32.xlu0 %v29, 44
  %v2643 = vpop.permute.xlu0 %2642
  %2644 = vrot.lane.b32.xlu0 %v19, 44
  %v2645 = vpop.permute.xlu0 %2644
  %2646 = vrot.lane.b32.xlu0 %v30, 44
  %v2647 = vpop.permute.xlu0 %2646
  %2648 = vrot.lane.b32.xlu0 %v20, 44
  %v2649 = vpop.permute.xlu0 %2648
  %vm2650 = vcmask 359424
  %v2651 = vsel %vm2650, %v2637, %v2639
  %v2652 = vsel %vm2650, %v2639, %v2641
  %v2653 = vsel %vm2650, %v2641, %v2643
  %v2654 = vsel %vm2650, %v2643, %v2645
  %v2655 = vsel %vm2650, %v2645, %v2647
  %v2656 = vsel %vm2650, %v2647, %v2649
  %v2658 = vsel %vm52, %v2635, 0
  %v2660 = vsel %vm56, %v2651, 0
  %v2662 = vsel %vm56, %v2652, 0
  %v2664 = vsel %vm56, %v2653, 0
  %v2666 = vsel %vm56, %v2654, 0
  %v2668 = vsel %vm56, %v2655, 0
  %v2670 = vsel %vm56, %v2656, 0
  %v2672 = vsel %vm56, %v2649, 0
  %2674 = vmatprep.subr.mxu0 %v2662
  %2675 = vmatpush1.msra.mxu0 %v2660
  %2676 = vmatprep.subr.mxu0 0.0
  %2677 = vmatpush1.msra.mxu0 0.0
  %2678 = vmatprep.subr.mxu0 0.0
  %2679 = vmatpush1.msra.mxu0 0.0
  %2680 = vmatprep.subr.mxu0 0.0
  %2681 = vmatpush1.msra.mxu0 0.0
  %2682 = vmatprep.subr.mxu0 0.0
  %2683 = vmatpush1.msra.mxu0 0.0
  %2684 = vmatprep.subr.mxu0 0.0
  %2685 = vmatpush1.msra.mxu0 0.0
  %2686 = vmatprep.subr.mxu0 0.0
  %2687 = vmatpush1.msra.mxu0 0.0
  %2688 = vmatprep.subr.mxu0 0.0
  %2689 = vmatpush1.msra.mxu0 0.0
  %2690 = vmatprep.subr.mxu0 0.0
  %2691 = vmatpush1.msra.mxu0 0.0
  %2692 = vmatprep.subr.mxu0 0.0
  %2693 = vmatpush1.msra.mxu0 0.0
  %2694 = vmatprep.subr.mxu0 0.0
  %2695 = vmatpush1.msra.mxu0 0.0
  %2696 = vmatprep.subr.mxu0 0.0
  %2697 = vmatpush1.msra.mxu0 0.0
  %2698 = vmatprep.subr.mxu0 0.0
  %2699 = vmatpush1.msra.mxu0 0.0
  %2700 = vmatprep.subr.mxu0 0.0
  %2701 = vmatpush1.msra.mxu0 0.0
  %2702 = vmatprep.subr.mxu0 0.0
  %2703 = vmatpush1.msra.mxu0 0.0
  %2704 = vmatprep.subr.mxu0 0.0
  %2705 = vmatpush1.msra.mxu0 0.0
  %2706 = vmatprep.subr.mxu0 0.0
  %2707 = vmatpush1.msra.mxu0 0.0
  %2708 = vmatprep.subr.mxu0 0.0
  %2709 = vmatpush1.msra.mxu0 0.0
  %2710 = vmatprep.subr.mxu0 0.0
  %2711 = vmatpush1.msra.mxu0 0.0
  %2712 = vmatprep.subr.mxu0 0.0
  %2713 = vmatpush1.msra.mxu0 0.0
  %2714 = vmatprep.subr.mxu0 0.0
  %2715 = vmatpush1.msra.mxu0 0.0
  %2716 = vmatprep.subr.mxu0 0.0
  %2717 = vmatpush1.msra.mxu0 0.0
  %2718 = vmatprep.subr.mxu0 0.0
  %2719 = vmatpush1.msra.mxu0 0.0
  %2720 = vmatprep.subr.mxu0 0.0
  %2721 = vmatpush1.msra.mxu0 0.0
  %2722 = vmatprep.subr.mxu0 0.0
  %2723 = vmatpush1.msra.mxu0 0.0
  %2724 = vmatprep.subr.mxu0 0.0
  %2725 = vmatpush1.msra.mxu0 0.0
  %2726 = vmatprep.subr.mxu0 0.0
  %2727 = vmatpush1.msra.mxu0 0.0
  %2728 = vmatprep.subr.mxu0 0.0
  %2729 = vmatpush1.msra.mxu0 0.0
  %2730 = vmatprep.subr.mxu0 0.0
  %2731 = vmatpush1.msra.mxu0 0.0
  %2732 = vmatprep.subr.mxu0 0.0
  %2733 = vmatpush1.msra.mxu0 0.0
  %2734 = vmatprep.subr.mxu0 0.0
  %2735 = vmatpush1.msra.mxu0 0.0
  %2736 = vmatprep.subr.mxu0 0.0
  %2737 = vmatpush1.msra.mxu0 0.0
  %2738 = vmatprep.mubr.f32.mxu0 0.0
  %2739 = vmatmul.mubr.f32.gmra.mrb[0].mxu0 %v2658
  %v2740 = vpop.f32.mrb[0].mxu0
  %v2741 = vadd.f32 0.0, %v2740
  %v2742 = vpop.f32.mrb[0].mxu0
  %v2743 = vadd.f32 0.0, %v2742
  %2744 = vdwg.mxu0
  %2745 = vmatprep.subr.mxu0 %v2666
  %2746 = vmatpush1.msra.mxu0 %v2664
  %2747 = vmatprep.subr.mxu0 0.0
  %2748 = vmatpush1.msra.mxu0 0.0
  %2749 = vmatprep.subr.mxu0 0.0
  %2750 = vmatpush1.msra.mxu0 0.0
  %2751 = vmatprep.subr.mxu0 0.0
  %2752 = vmatpush1.msra.mxu0 0.0
  %2753 = vmatprep.subr.mxu0 0.0
  %2754 = vmatpush1.msra.mxu0 0.0
  %2755 = vmatprep.subr.mxu0 0.0
  %2756 = vmatpush1.msra.mxu0 0.0
  %2757 = vmatprep.subr.mxu0 0.0
  %2758 = vmatpush1.msra.mxu0 0.0
  %2759 = vmatprep.subr.mxu0 0.0
  %2760 = vmatpush1.msra.mxu0 0.0
  %2761 = vmatprep.subr.mxu0 0.0
  %2762 = vmatpush1.msra.mxu0 0.0
  %2763 = vmatprep.subr.mxu0 0.0
  %2764 = vmatpush1.msra.mxu0 0.0
  %2765 = vmatprep.subr.mxu0 0.0
  %2766 = vmatpush1.msra.mxu0 0.0
  %2767 = vmatprep.subr.mxu0 0.0
  %2768 = vmatpush1.msra.mxu0 0.0
  %2769 = vmatprep.subr.mxu0 0.0
  %2770 = vmatpush1.msra.mxu0 0.0
  %2771 = vmatprep.subr.mxu0 0.0
  %2772 = vmatpush1.msra.mxu0 0.0
  %2773 = vmatprep.subr.mxu0 0.0
  %2774 = vmatpush1.msra.mxu0 0.0
  %2775 = vmatprep.subr.mxu0 0.0
  %2776 = vmatpush1.msra.mxu0 0.0
  %2777 = vmatprep.subr.mxu0 0.0
  %2778 = vmatpush1.msra.mxu0 0.0
  %2779 = vmatprep.subr.mxu0 0.0
  %2780 = vmatpush1.msra.mxu0 0.0
  %2781 = vmatprep.subr.mxu0 0.0
  %2782 = vmatpush1.msra.mxu0 0.0
  %2783 = vmatprep.subr.mxu0 0.0
  %2784 = vmatpush1.msra.mxu0 0.0
  %2785 = vmatprep.subr.mxu0 0.0
  %2786 = vmatpush1.msra.mxu0 0.0
  %2787 = vmatprep.subr.mxu0 0.0
  %2788 = vmatpush1.msra.mxu0 0.0
  %2789 = vmatprep.subr.mxu0 0.0
  %2790 = vmatpush1.msra.mxu0 0.0
  %2791 = vmatprep.subr.mxu0 0.0
  %2792 = vmatpush1.msra.mxu0 0.0
  %2793 = vmatprep.subr.mxu0 0.0
  %2794 = vmatpush1.msra.mxu0 0.0
  %2795 = vmatprep.subr.mxu0 0.0
  %2796 = vmatpush1.msra.mxu0 0.0
  %2797 = vmatprep.subr.mxu0 0.0
  %2798 = vmatpush1.msra.mxu0 0.0
  %2799 = vmatprep.subr.mxu0 0.0
  %2800 = vmatpush1.msra.mxu0 0.0
  %2801 = vmatprep.subr.mxu0 0.0
  %2802 = vmatpush1.msra.mxu0 0.0
  %2803 = vmatprep.subr.mxu0 0.0
  %2804 = vmatpush1.msra.mxu0 0.0
  %2805 = vmatprep.subr.mxu0 0.0
  %2806 = vmatpush1.msra.mxu0 0.0
  %2807 = vmatprep.subr.mxu0 0.0
  %2808 = vmatpush1.msra.mxu0 0.0
  %2809 = vmatprep.mubr.f32.mxu0 0.0
  %2810 = vmatmul.mubr.f32.gmra.mrb[0].mxu0 %v2658
  %v2811 = vpop.f32.mrb[0].mxu0
  %v2812 = vadd.f32 0.0, %v2811
  %v2813 = vpop.f32.mrb[0].mxu0
  %v2814 = vadd.f32 0.0, %v2813
  %2815 = vdwg.mxu0
  %2816 = vmatprep.subr.mxu0 %v2670
  %2817 = vmatpush1.msra.mxu0 %v2668
  %2818 = vmatprep.subr.mxu0 0.0
  %2819 = vmatpush1.msra.mxu0 0.0
  %2820 = vmatprep.subr.mxu0 0.0
  %2821 = vmatpush1.msra.mxu0 0.0
  %2822 = vmatprep.subr.mxu0 0.0
  %2823 = vmatpush1.msra.mxu0 0.0
  %2824 = vmatprep.subr.mxu0 0.0
  %2825 = vmatpush1.msra.mxu0 0.0
  %2826 = vmatprep.subr.mxu0 0.0
  %2827 = vmatpush1.msra.mxu0 0.0
  %2828 = vmatprep.subr.mxu0 0.0
  %2829 = vmatpush1.msra.mxu0 0.0
  %2830 = vmatprep.subr.mxu0 0.0
  %2831 = vmatpush1.msra.mxu0 0.0
  %2832 = vmatprep.subr.mxu0 0.0
  %2833 = vmatpush1.msra.mxu0 0.0
  %2834 = vmatprep.subr.mxu0 0.0
  %2835 = vmatpush1.msra.mxu0 0.0
  %2836 = vmatprep.subr.mxu0 0.0
  %2837 = vmatpush1.msra.mxu0 0.0
  %2838 = vmatprep.subr.mxu0 0.0
  %2839 = vmatpush1.msra.mxu0 0.0
  %2840 = vmatprep.subr.mxu0 0.0
  %2841 = vmatpush1.msra.mxu0 0.0
  %2842 = vmatprep.subr.mxu0 0.0
  %2843 = vmatpush1.msra.mxu0 0.0
  %2844 = vmatprep.subr.mxu0 0.0
  %2845 = vmatpush1.msra.mxu0 0.0
  %2846 = vmatprep.subr.mxu0 0.0
  %2847 = vmatpush1.msra.mxu0 0.0
  %2848 = vmatprep.subr.mxu0 0.0
  %2849 = vmatpush1.msra.mxu0 0.0
  %2850 = vmatprep.subr.mxu0 0.0
  %2851 = vmatpush1.msra.mxu0 0.0
  %2852 = vmatprep.subr.mxu0 0.0
  %2853 = vmatpush1.msra.mxu0 0.0
  %2854 = vmatprep.subr.mxu0 0.0
  %2855 = vmatpush1.msra.mxu0 0.0
  %2856 = vmatprep.subr.mxu0 0.0
  %2857 = vmatpush1.msra.mxu0 0.0
  %2858 = vmatprep.subr.mxu0 0.0
  %2859 = vmatpush1.msra.mxu0 0.0
  %2860 = vmatprep.subr.mxu0 0.0
  %2861 = vmatpush1.msra.mxu0 0.0
  %2862 = vmatprep.subr.mxu0 0.0
  %2863 = vmatpush1.msra.mxu0 0.0
  %2864 = vmatprep.subr.mxu0 0.0
  %2865 = vmatpush1.msra.mxu0 0.0
  %2866 = vmatprep.subr.mxu0 0.0
  %2867 = vmatpush1.msra.mxu0 0.0
  %2868 = vmatprep.subr.mxu0 0.0
  %2869 = vmatpush1.msra.mxu0 0.0
  %2870 = vmatprep.subr.mxu0 0.0
  %2871 = vmatpush1.msra.mxu0 0.0
  %2872 = vmatprep.subr.mxu0 0.0
  %2873 = vmatpush1.msra.mxu0 0.0
  %2874 = vmatprep.subr.mxu0 0.0
  %2875 = vmatpush1.msra.mxu0 0.0
  %2876 = vmatprep.subr.mxu0 0.0
  %2877 = vmatpush1.msra.mxu0 0.0
  %2878 = vmatprep.subr.mxu0 0.0
  %2879 = vmatpush1.msra.mxu0 0.0
  %2880 = vmatprep.mubr.f32.mxu0 0.0
  %2881 = vmatmul.mubr.f32.gmra.mrb[0].mxu0 %v2658
  %v2882 = vpop.f32.mrb[0].mxu0
  %v2883 = vadd.f32 0.0, %v2882
  %v2884 = vpop.f32.mrb[0].mxu0
  %v2885 = vadd.f32 0.0, %v2884
  %2886 = vdwg.mxu0
  %2887 = vmatprep.subr.mxu0 0.0
  %2888 = vmatpush1.msra.mxu0 %v2672
  %2889 = vmatprep.subr.mxu0 0.0
  %2890 = vmatpush1.msra.mxu0 0.0
  %2891 = vmatprep.subr.mxu0 0.0
  %2892 = vmatpush1.msra.mxu0 0.0
  %2893 = vmatprep.subr.mxu0 0.0
  %2894 = vmatpush1.msra.mxu0 0.0
  %2895 = vmatprep.subr.mxu0 0.0
  %2896 = vmatpush1.msra.mxu0 0.0
  %2897 = vmatprep.subr.mxu0 0.0
  %2898 = vmatpush1.msra.mxu0 0.0
  %2899 = vmatprep.subr.mxu0 0.0
  %2900 = vmatpush1.msra.mxu0 0.0
  %2901 = vmatprep.subr.mxu0 0.0
  %2902 = vmatpush1.msra.mxu0 0.0
  %2903 = vmatprep.subr.mxu0 0.0
  %2904 = vmatpush1.msra.mxu0 0.0
  %2905 = vmatprep.subr.mxu0 0.0
  %2906 = vmatpush1.msra.mxu0 0.0
  %2907 = vmatprep.subr.mxu0 0.0
  %2908 = vmatpush1.msra.mxu0 0.0
  %2909 = vmatprep.subr.mxu0 0.0
  %2910 = vmatpush1.msra.mxu0 0.0
  %2911 = vmatprep.subr.mxu0 0.0
  %2912 = vmatpush1.msra.mxu0 0.0
  %2913 = vmatprep.subr.mxu0 0.0
  %2914 = vmatpush1.msra.mxu0 0.0
  %2915 = vmatprep.subr.mxu0 0.0
  %2916 = vmatpush1.msra.mxu0 0.0
  %2917 = vmatprep.subr.mxu0 0.0
  %2918 = vmatpush1.msra.mxu0 0.0
  %2919 = vmatprep.subr.mxu0 0.0
  %2920 = vmatpush1.msra.mxu0 0.0
  %2921 = vmatprep.subr.mxu0 0.0
  %2922 = vmatpush1.msra.mxu0 0.0
  %2923 = vmatprep.subr.mxu0 0.0
  %2924 = vmatpush1.msra.mxu0 0.0
  %2925 = vmatprep.subr.mxu0 0.0
  %2926 = vmatpush1.msra.mxu0 0.0
  %2927 = vmatprep.subr.mxu0 0.0
  %2928 = vmatpush1.msra.mxu0 0.0
  %2929 = vmatprep.subr.mxu0 0.0
  %2930 = vmatpush1.msra.mxu0 0.0
  %2931 = vmatprep.subr.mxu0 0.0
  %2932 = vmatpush1.msra.mxu0 0.0
  %2933 = vmatprep.subr.mxu0 0.0
  %2934 = vmatpush1.msra.mxu0 0.0
  %2935 = vmatprep.subr.mxu0 0.0
  %2936 = vmatpush1.msra.mxu0 0.0
  %2937 = vmatprep.subr.mxu0 0.0
  %2938 = vmatpush1.msra.mxu0 0.0
  %2939 = vmatprep.subr.mxu0 0.0
  %2940 = vmatpush1.msra.mxu0 0.0
  %2941 = vmatprep.subr.mxu0 0.0
  %2942 = vmatpush1.msra.mxu0 0.0
  %2943 = vmatprep.subr.mxu0 0.0
  %2944 = vmatpush1.msra.mxu0 0.0
  %2945 = vmatprep.subr.mxu0 0.0
  %2946 = vmatpush1.msra.mxu0 0.0
  %2947 = vmatprep.subr.mxu0 0.0
  %2948 = vmatpush1.msra.mxu0 0.0
  %2949 = vmatprep.subr.mxu0 0.0
  %2950 = vmatpush1.msra.mxu0 0.0
  %2951 = vmatprep.mubr.f32.mxu0 0.0
  %2952 = vmatmul.mubr.f32.gmra.mrb[0].mxu0 %v2658
  %v2953 = vpop.f32.mrb[0].mxu0
  %v2954 = vadd.f32 0.0, %v2953
  %v2955 = vpop.f32.mrb[0].mxu0
  %2956 = vdwg.mxu0
  %v2957 = vadd.f32 %v2627, %v2741
  %v2958 = vadd.f32 %v2628, %v2743
  %v2959 = vadd.f32 %v2629, %v2812
  %v2960 = vadd.f32 %v2630, %v2814
  %v2961 = vadd.f32 %v2631, %v2883
  %v2962 = vadd.f32 %v2632, %v2885
  %v2963 = vadd.f32 %v2633, %v2954
  %v2964 = vld [vmem:[%s3] sm:$0x7f]
  %v2966 = vlaneseq
  %v2967 = vshrl.u32 %v2966, 7
  %v2968 = vsub.s32 0, %v2967
  %v2969 = vrot.slane %v2964, %v2968
  %v2970 = vlaneseq
  %v2971 = vshrl.u32 %v2970, 7
  %v2972 = vsub.s32 1, %v2971
  %v2973 = vrot.slane %v2964, %v2972
  %v2974 = vlaneseq
  %v2975 = vshrl.u32 %v2974, 7
  %v2976 = vsub.s32 2, %v2975
  %v2977 = vrot.slane %v2964, %v2976
  %v2978 = vlaneseq
  %v2979 = vshrl.u32 %v2978, 7
  %v2980 = vsub.s32 3, %v2979
  %v2981 = vrot.slane %v2964, %v2980
  %v2982 = vlaneseq
  %v2983 = vshrl.u32 %v2982, 7
  %v2984 = vsub.s32 4, %v2983
  %v2985 = vrot.slane %v2964, %v2984
  %v2986 = vlaneseq
  %v2987 = vshrl.u32 %v2986, 7
  %v2988 = vsub.s32 5, %v2987
  %v2989 = vrot.slane %v2964, %v2988
  %v2990 = vlaneseq
  %v2991 = vshrl.u32 %v2990, 7
  %v2992 = vsub.s32 6, %v2991
  %v2993 = vrot.slane %v2964, %v2992
  %v3001 = vmul.f32 %v2957, %v2969
  %v3002 = vmul.f32 %v2958, %v2973
  %v3003 = vmul.f32 %v2959, %v2977
  %v3004 = vmul.f32 %v2960, %v2981
  %v3005 = vmul.f32 %v2961, %v2985
  %v3006 = vmul.f32 %v2962, %v2989
  %v3007 = vmul.f32 %v2963, %v2993
  %v3008 = vmul.f32 %v3001, %v3001
  %v3009 = vmul.f32 %v3002, %v3002
  %v3010 = vmul.f32 %v3003, %v3003
  %v3011 = vmul.f32 %v3004, %v3004
  %v3012 = vmul.f32 %v3005, %v3005
  %v3013 = vmul.f32 %v3006, %v3006
  %v3014 = vmul.f32 %v3007, %v3007
  %v3015 = vadd.f32 %v3001, %v3002
  %v3016 = vadd.f32 %v3015, %v3003
  %v3017 = vadd.f32 %v3016, %v3004
  %v3018 = vadd.f32 %v3017, %v3005
  %v3019 = vadd.f32 %v3018, %v3006
  %vm3020 = vcmask 261120
  %v3021 = vsel %vm3020, %v3007, 0.0
  %v3022 = vadd.f32 %v3019, %v3021
  %3023 = vadd.xlane.f32.xlu0 %v3022
  %v3024 = vpop.xlane.xlu0 %3023
  %v3025 = vadd.f32 %v3008, %v3009
  %v3026 = vadd.f32 %v3025, %v3010
  %v3027 = vadd.f32 %v3026, %v3011
  %v3028 = vadd.f32 %v3027, %v3012
  %v3029 = vadd.f32 %v3028, %v3013
  %v3030 = vsel %vm3020, %v3014, 0.0
  %v3031 = vadd.f32 %v3029, %v3030
  %3032 = vadd.xlane.f32.xlu0 %v3031
  %v3033 = vpop.xlane.xlu0 %3032
  %v3034 = vmul.f32 %v3024, 0.001953125
  %v3035 = vmul.f32 %v3033, 0.001953125
  %v3036 = vmul.f32 %v3034, %v3034
  %v3037 = vsub.f32 %v3035, %v3036
  %v3038 = vmax.f32 %v3037, 0.0
  %v3039 = vld [vmem:[%s2] sm:$0xff]
  %v3040 = vadd.f32 %v3038, 1e-05
  %v3041 = vrsqrt.pop %v3040
  %v3042 = vmul.f32 %v3039, %v3041
  %v3043 = vmul.f32 %v3034, %v3042
  %3045 = vrot.lane.b32.xlu0 %v3043, 1
  %v3046 = vpop.permute.xlu0 %3045
  %v3048 = vsub.f32 %v3039, %v3046
  %3050 = vset.pattern.permute.xlu0 0
  %3051 = vperm.xlu0 %3050, %v3042
  %v3052 = vpop.permute.xlu0 %3051
  %v3054 = vmul.f32 %v2957, %v3052
  %v3055 = vmul.f32 %v2958, %v3052
  %v3056 = vmul.f32 %v2959, %v3052
  %v3057 = vmul.f32 %v2960, %v3052
  %v3058 = vmul.f32 %v2961, %v3052
  %v3059 = vmul.f32 %v2962, %v3052
  %v3060 = vmul.f32 %v2963, %v3052
  %3062 = vset.pattern.permute.xlu0 1
  %3063 = vperm.xlu0 %3062, %v3048
  %v3064 = vpop.permute.xlu0 %3063
  %v3066 = vadd.f32 %v3054, %v3064
  %v3067 = vadd.f32 %v3055, %v3064
  %v3068 = vadd.f32 %v3056, %v3064
  %v3069 = vadd.f32 %v3057, %v3064
  %v3070 = vadd.f32 %v3058, %v3064
  %v3071 = vadd.f32 %v3059, %v3064
  %v3072 = vadd.f32 %v3060, %v3064
  %v3073 = vmax.f32 %v3066, 0.0
  %v3074 = vmax.f32 %v3067, 0.0
  %v3075 = vmax.f32 %v3068, 0.0
  %v3076 = vmax.f32 %v3069, 0.0
  %v3077 = vmax.f32 %v3070, 0.0
  %v3078 = vmax.f32 %v3071, 0.0
  %v3079 = vmax.f32 %v3072, 0.0
  %3080 = vst [vmem:[%s4] sm:$0xff] %v3073
  %3081 = vst [vmem:[%s4 + $0x8] sm:$0xff] %v3074
  %3082 = vst [vmem:[%s4 + $0x10] sm:$0xff] %v3075
  %3083 = vst [vmem:[%s4 + $0x18] sm:$0xff] %v3076
  %3084 = vst [vmem:[%s4 + $0x20] sm:$0xff] %v3077
  %3085 = vst [vmem:[%s4 + $0x28] sm:$0xff] %v3078
  %3086 = vst.msk [vmem:[%s4 + $0x30] sm:$0xff] %vm3020, %v3079
  // Predicated region
  $region18: #{aspp_forward.1} parent=0 // pred_check
    _
  $region19: #{aspp_forward.1} parent=0 // pred_check_branch
    %3088 = sbr.rel (0) target = $region21
  $region20: #{aspp_forward.1} parent=0 // pred_region
    _
  $region21: #{aspp_forward.1} parent=0 // pred_fallthru
    _
  // Predicated region
  $region22: #{aspp_forward.1} parent=0 // pred_check
    _
  $region23: #{aspp_forward.1} parent=0 // pred_check_branch
    %3090 = sbr.rel (0) target = $region25
  $region24: #{aspp_forward.1} parent=0 // pred_region
    _
  $region25: #{aspp_forward.1} parent=0 // pred_fallthru
    _

</llo_original>
